<compile_context>
chip_gen: v5e
topology: v5e:2x2
jax: 0.10.0
libtpu: 0.0.40
codegen_flags: <defaults>
</compile_context>

<pallas_src>
import functools

import jax
import jax.numpy as jnp
from jax.experimental import pallas as pl
from jax.experimental.pallas import tpu as pltpu

# ------------------------- model hyper-parameters -------------------------
N_ATOM_FEATURES = 28        # utils.N_atom_features
N_EXTRA_ATOM_FEATURES = 0   # utils.N_extra_atom_features
HIDDEN_DIM = 32             # args.hidden_dim
N_GCN_LAYER = 3             # args.N_GCN_layer
N_PREDICTOR_LAYER = 2       # args.N_predictor_layer (=> 1 hidden FC + final)
N_PROPERTIES = 4            # args.N_properties

IN_FEAT = N_ATOM_FEATURES + N_EXTRA_ATOM_FEATURES


def _round_up(x, m):
    return (x + m - 1) // m * m


# ------------------------------ Pallas kernel ------------------------------
def _gcn_kernel(x_ref, a_ref,
                w_emb_ref, b_emb_ref,
                w_gcn_ref, b_gcn_ref,
                w_ro_ref, b_ro_ref,
                w_fc_ref, b_fc_ref,
                w_out_ref, b_out_ref,
                out_ref,
                *, n_gcn_layers, n_fc_hidden):
    BB, N, Fin = x_ref.shape
    H = w_emb_ref.shape[1]

    # Flatten the batch*atom axes so every node-wise linear is one big MXU op.
    x = x_ref[...].astype(jnp.float32).reshape(BB * N, Fin)    # (BB*N, Fin)
    A = a_ref[...].astype(jnp.float32)                         # (BB, N, N)

    # embed_graph
    h = jnp.dot(x, w_emb_ref[...], preferred_element_type=jnp.float32)
    h = h + b_emb_ref[...]                                     # (BB*N, H)

    # GCN layers: relu(A @ (h W + b))
    for l in range(n_gcn_layers):
        hw = jnp.dot(h, w_gcn_ref[l], preferred_element_type=jnp.float32)
        hw = (hw + b_gcn_ref[l]).reshape(BB, N, H)
        agg = jnp.einsum("bnm,bmh->bnh", A, hw,
                         preferred_element_type=jnp.float32)
        h = jnp.maximum(agg, 0.0).reshape(BB * N, H)

    # readout
    h = jnp.dot(h, w_ro_ref[...], preferred_element_type=jnp.float32)
    h = h + b_ro_ref[...]                                      # (BB*N, H)

    # mean over atoms, then relu
    g = jnp.mean(h.reshape(BB, N, H), axis=1)                  # (BB, H)
    g = jnp.maximum(g, 0.0)

    # predictor hidden layers (Linear -> Dropout(id) -> ReLU)
    for l in range(n_fc_hidden):
        g = jnp.dot(g, w_fc_ref[l], preferred_element_type=jnp.float32)
        g = jnp.maximum(g + b_fc_ref[l], 0.0)

    # final Linear (lane-padded to 128 output columns for a dense store)
    out = jnp.dot(g, w_out_ref[...], preferred_element_type=jnp.float32)
    out = out + b_out_ref[...]                                 # (BB, P_pad)
    out_ref[...] = out.astype(out_ref.dtype)


def _choose_block_b(B, N, Fin, H):
    """Pick a batch block that is a multiple of 8 and fits comfortably in VMEM
    (~20 MiB budget, well under the 32 MiB default scoped limit on v7x)."""
    budget = 20 * 1024 * 1024
    per_graph = (2 * (N * Fin * 4 + N * N * 2)      # double-buffered x(f32)+A(bf16)
                 + (3 * N * H + N * N) * 4)         # f32 intermediates (h, hw, A)
    bb = budget // max(per_graph, 1)
    bb = max(8, min(bb, 512))
    bb = min(bb, _round_up(B, 8))
    return _round_up(bb, 8)


def gcn_forward(x, A, atom_mask, params, *, block_b=None):
    """x: (B, N, Fin) f32, A: (B, N, N) f32, atom_mask: (B, N) (unused)."""
    del atom_mask  # unused in the reference forward()
    B, N, Fin = x.shape
    H = params["w_emb"].shape[1]
    P = params["w_out"].shape[1]
    n_fc_hidden = params["w_fc"].shape[0]
    n_gcn = params["w_gcn"].shape[0]

    BB = _choose_block_b(B, N, Fin, H) if block_b is None else _round_up(block_b, 8)
    B_pad = _round_up(B, BB)
    if B_pad != B:
        pad = B_pad - B
        x = jnp.pad(x, ((0, pad), (0, 0), (0, 0)))
        A = jnp.pad(A, ((0, pad), (0, 0), (0, 0)))

    # bf16 adjacency for HBM transfer (values are small integers -> exact).
    A_bf16 = A.astype(jnp.bfloat16)

    # Lane-dense final projection: pad N_properties up to 128 output lanes.
    P_pad = _round_up(max(P, 128), 128)
    w_out = jnp.pad(params["w_out"], ((0, 0), (0, P_pad - P)))
    b_out = jnp.pad(params["b_out"], ((0, 0), (0, P_pad - P)))

    kernel = functools.partial(_gcn_kernel,
                               n_gcn_layers=n_gcn,
                               n_fc_hidden=n_fc_hidden)

    def full(shape):
        nd = len(shape)
        return pl.BlockSpec(shape, lambda i, _nd=nd: (0,) * _nd)

    grid_spec = pltpu.PrefetchScalarGridSpec(
        num_scalar_prefetch=0,
        grid=(B_pad // BB,),
        in_specs=[
            pl.BlockSpec((BB, N, Fin), lambda i: (i, 0, 0)),   # x per batch block
            pl.BlockSpec((BB, N, N), lambda i: (i, 0, 0)),     # A per batch block
            full(params["w_emb"].shape),
            full(params["b_emb"].shape),
            full(params["w_gcn"].shape),
            full(params["b_gcn"].shape),
            full(params["w_ro"].shape),
            full(params["b_ro"].shape),
            full(params["w_fc"].shape),
            full(params["b_fc"].shape),
            full(w_out.shape),
            full(b_out.shape),
        ],
        out_specs=pl.BlockSpec((BB, P_pad), lambda i: (i, 0)),
    )

    # Advisory cost estimate so XLA schedules/overlaps the call sensibly.
    weight_bytes = sum(int(v.size) * 4 for v in params.values())
    flops = 2 * B_pad * (N * Fin * H
                         + n_gcn * (N * H * H + N * N * H)
                         + N * H * H
                         + n_fc_hidden * H * H
                         + H * P_pad)
    bytes_accessed = (B_pad * (N * Fin * 4 + N * N * 2)
                      + weight_bytes
                      + B_pad * P_pad * 4)
    cost = pl.CostEstimate(flops=flops, transcendentals=0,
                           bytes_accessed=bytes_accessed)

    out_padded = pl.pallas_call(
        kernel,
        out_shape=jax.ShapeDtypeStruct((B_pad, P_pad), jnp.float32),
        grid_spec=grid_spec,
        compiler_params=pltpu.CompilerParams(
            dimension_semantics=("parallel",)),
        cost_estimate=cost,
    )(x, A_bf16,
      params["w_emb"], params["b_emb"],
      params["w_gcn"], params["b_gcn"],
      params["w_ro"], params["b_ro"],
      params["w_fc"], params["b_fc"],
      w_out, b_out)

    return out_padded[:B, :P]


# --------------------------- pure-JAX reference ----------------------------
def gcn_reference(x, A, params):
    h = jnp.einsum("bnf,fh->bnh", x, params["w_emb"]) + params["b_emb"]
    for l in range(params["w_gcn"].shape[0]):
        hw = jnp.einsum("bnh,hk->bnk", h, params["w_gcn"][l]) + params["b_gcn"][l]
        h = jax.nn.relu(jnp.einsum("bnm,bmh->bnh", A, hw))
    h = jnp.einsum("bnh,hk->bnk", h, params["w_ro"]) + params["b_ro"]
    g = jax.nn.relu(h.mean(axis=1))
    for l in range(params["w_fc"].shape[0]):
        g = jax.nn.relu(g @ params["w_fc"][l] + params["b_fc"][l])
    return g @ params["w_out"] + params["b_out"]


# ------------------------------- parameters --------------------------------
def init_params(key):
    H, Fin, P = HIDDEN_DIM, IN_FEAT, N_PROPERTIES
    n_hid_fc = N_PREDICTOR_LAYER - 1
    ks = jax.random.split(key, 12)
    scale = 0.1
    return {
        "w_emb": scale * jax.random.normal(ks[0], (Fin, H), jnp.float32),
        "b_emb": scale * jax.random.normal(ks[1], (1, H), jnp.float32),
        "w_gcn": scale * jax.random.normal(ks[2], (N_GCN_LAYER, H, H), jnp.float32),
        "b_gcn": scale * jax.random.normal(ks[3], (N_GCN_LAYER, 1, H), jnp.float32),
        "w_ro": scale * jax.random.normal(ks[4], (H, H), jnp.float32),
        "b_ro": scale * jax.random.normal(ks[5], (1, H), jnp.float32),
        "w_fc": scale * jax.random.normal(ks[6], (n_hid_fc, H, H), jnp.float32),
        "b_fc": scale * jax.random.normal(ks[7], (n_hid_fc, 1, H), jnp.float32),
        "w_out": scale * jax.random.normal(ks[8], (H, P), jnp.float32),
        "b_out": scale * jax.random.normal(ks[9], (1, P), jnp.float32),
    }


if __name__ == "__main__":
    key = jax.random.PRNGKey(0)
    k_x, k_a, k_p = jax.random.split(key, 3)

    B, N = 20, 16
    x = jax.random.normal(k_x, (B, N, IN_FEAT), jnp.float32)
    # symmetric adjacency with self-loops (0/1/2 values, exact in bf16)
    a_raw = (jax.random.uniform(k_a, (B, N, N)) > 0.7).astype(jnp.float32)
    A = jnp.clip(a_raw + jnp.transpose(a_raw, (0, 2, 1)), 0.0, 1.0)
    A = A + jnp.eye(N, dtype=jnp.float32)[None]
    atom_mask = jnp.ones((B, N), jnp.float32)

    params = init_params(k_p)

    # block_b=8 exercises a multi-step grid (B padded 20 -> 24, grid=(3,)).
    out = gcn_forward(x, A, atom_mask, params, block_b=8)
    out = jax.block_until_ready(out)

    ref = gcn_reference(x, A, params)
    assert out.shape == (B, N_PROPERTIES)
    assert jnp.allclose(out, ref, atol=1e-4, rtol=1e-4), (out, ref)

    print("KERNEL_OK")
</pallas_src>

<mosaic_0001>
module attributes {stable_mosaic.version = 11 : i64} {
  func.func @_gcn_kernel(%arg0: i32, %arg1: memref<8x16x28xf32, #tpu.memory_space<vmem>>, %arg2: memref<8x16x16xbf16, #tpu.memory_space<vmem>>, %arg3: memref<28x32xf32, #tpu.memory_space<vmem>>, %arg4: memref<1x32xf32, #tpu.memory_space<vmem>>, %arg5: memref<3x32x32xf32, #tpu.memory_space<vmem>>, %arg6: memref<3x1x32xf32, #tpu.memory_space<vmem>>, %arg7: memref<32x32xf32, #tpu.memory_space<vmem>>, %arg8: memref<1x32xf32, #tpu.memory_space<vmem>>, %arg9: memref<1x32x32xf32, #tpu.memory_space<vmem>>, %arg10: memref<1x1x32xf32, #tpu.memory_space<vmem>>, %arg11: memref<32x128xf32, #tpu.memory_space<vmem>>, %arg12: memref<1x128xf32, #tpu.memory_space<vmem>>, %arg13: memref<8x128xf32, #tpu.memory_space<vmem>>) attributes {dimension_semantics = [#tpu.dimension_semantics<parallel>], iteration_bounds = array<i64: 3>, scalar_prefetch = 0 : i64, scratch_operands = 0 : i64, tpu.core_type = #tpu.core_type<tc>, window_params = [{transform_indices = @transform_0, window_bounds = array<i64: 8, 16, 28>}, {transform_indices = @transform_1, window_bounds = array<i64: 8, 16, 16>}, {pipeline_mode = #tpu.pipeline_mode<synchronous>, transform_indices = @transform_2, window_bounds = array<i64: 28, 32>}, {pipeline_mode = #tpu.pipeline_mode<synchronous>, transform_indices = @transform_3, window_bounds = array<i64: 1, 32>}, {pipeline_mode = #tpu.pipeline_mode<synchronous>, transform_indices = @transform_4, window_bounds = array<i64: 3, 32, 32>}, {pipeline_mode = #tpu.pipeline_mode<synchronous>, transform_indices = @transform_5, window_bounds = array<i64: 3, 1, 32>}, {pipeline_mode = #tpu.pipeline_mode<synchronous>, transform_indices = @transform_6, window_bounds = array<i64: 32, 32>}, {pipeline_mode = #tpu.pipeline_mode<synchronous>, transform_indices = @transform_7, window_bounds = array<i64: 1, 32>}, {pipeline_mode = #tpu.pipeline_mode<synchronous>, transform_indices = @transform_8, window_bounds = array<i64: 1, 32, 32>}, {pipeline_mode = #tpu.pipeline_mode<synchronous>, transform_indices = @transform_9, window_bounds = array<i64: 1, 1, 32>}, {pipeline_mode = #tpu.pipeline_mode<synchronous>, transform_indices = @transform_10, window_bounds = array<i64: 32, 128>}, {pipeline_mode = #tpu.pipeline_mode<synchronous>, transform_indices = @transform_11, window_bounds = array<i64: 1, 128>}, {transform_indices = @transform_12, window_bounds = array<i64: 8, 128>}]} {
    %c0 = arith.constant 0 : index
    %c0_0 = arith.constant 0 : index
    %c0_1 = arith.constant 0 : index
    %0 = vector.load %arg1[%c0, %c0_0, %c0_1] : memref<8x16x28xf32, #tpu.memory_space<vmem>>, vector<8x16x28xf32>
    %1 = vector.shape_cast %0 : vector<8x16x28xf32> to vector<128x28xf32>
    %c0_2 = arith.constant 0 : index
    %c0_3 = arith.constant 0 : index
    %c0_4 = arith.constant 0 : index
    %2 = vector.load %arg2[%c0_2, %c0_3, %c0_4] : memref<8x16x16xbf16, #tpu.memory_space<vmem>>, vector<8x16x16xbf16>
    %3 = arith.extf %2 : vector<8x16x16xbf16> to vector<8x16x16xf32>
    %c0_5 = arith.constant 0 : index
    %c0_6 = arith.constant 0 : index
    %4 = vector.load %arg3[%c0_5, %c0_6] : memref<28x32xf32, #tpu.memory_space<vmem>>, vector<28x32xf32>
    %cst = arith.constant dense<0.000000e+00> : vector<128x32xf32>
    %5 = tpu.matmul %1, %4, %cst {dimension_numbers = #tpu.dot_dimension_numbers<[1], [0], [0], [1], [0, 0, 1, 1], [], []>} : vector<128x28xf32>, vector<28x32xf32>, vector<128x32xf32> -> vector<128x32xf32>
    %c0_7 = arith.constant 0 : index
    %c0_8 = arith.constant 0 : index
    %6 = vector.load %arg4[%c0_7, %c0_8] : memref<1x32xf32, #tpu.memory_space<vmem>>, vector<1x32xf32>
    %7 = vector.broadcast %6 : vector<1x32xf32> to vector<128x32xf32>
    %8 = arith.addf %5, %7 : vector<128x32xf32>
    %c0_9 = arith.constant 0 : index
    %c0_10 = arith.constant 0 : index
    %c0_11 = arith.constant 0 : index
    %9 = vector.load %arg5[%c0_9, %c0_10, %c0_11] : memref<3x32x32xf32, #tpu.memory_space<vmem>>, vector<1x32x32xf32>
    %10 = vector.shape_cast %9 : vector<1x32x32xf32> to vector<32x32xf32>
    %cst_12 = arith.constant dense<0.000000e+00> : vector<128x32xf32>
    %11 = tpu.matmul %8, %10, %cst_12 {dimension_numbers = #tpu.dot_dimension_numbers<[1], [0], [0], [1], [0, 0, 1, 1], [], []>} : vector<128x32xf32>, vector<32x32xf32>, vector<128x32xf32> -> vector<128x32xf32>
    %c0_13 = arith.constant 0 : index
    %c0_14 = arith.constant 0 : index
    %c0_15 = arith.constant 0 : index
    %12 = vector.load %arg6[%c0_13, %c0_14, %c0_15] : memref<3x1x32xf32, #tpu.memory_space<vmem>>, vector<1x1x32xf32>
    %13 = vector.shape_cast %12 : vector<1x1x32xf32> to vector<1x32xf32>
    %14 = vector.broadcast %13 : vector<1x32xf32> to vector<128x32xf32>
    %15 = arith.addf %11, %14 : vector<128x32xf32>
    %16 = vector.shape_cast %15 : vector<128x32xf32> to vector<8x16x32xf32>
    "tpu.trace_start"() <{level = 10 : i32, message = "bnm,bmh->bnh"}> : () -> ()
    %cst_16 = arith.constant dense<0.000000e+00> : vector<8x16x32xf32>
    %17 = tpu.matmul %3, %16, %cst_16 {dimension_numbers = #tpu.dot_dimension_numbers<[2], [1], [1], [2], [0, 0, 0, 1, 1, 2], [0], [0]>} : vector<8x16x16xf32>, vector<8x16x32xf32>, vector<8x16x32xf32> -> vector<8x16x32xf32>
    "tpu.trace_stop"() : () -> ()
    %cst_17 = arith.constant 0.000000e+00 : f32
    %18 = vector.broadcast %cst_17 : f32 to vector<8x16x32xf32>
    %19 = arith.maximumf %17, %18 : vector<8x16x32xf32>
    %20 = vector.shape_cast %19 : vector<8x16x32xf32> to vector<128x32xf32>
    %c1 = arith.constant 1 : index
    %c0_18 = arith.constant 0 : index
    %c0_19 = arith.constant 0 : index
    %21 = vector.load %arg5[%c1, %c0_18, %c0_19] : memref<3x32x32xf32, #tpu.memory_space<vmem>>, vector<1x32x32xf32>
    %22 = vector.shape_cast %21 : vector<1x32x32xf32> to vector<32x32xf32>
    %cst_20 = arith.constant dense<0.000000e+00> : vector<128x32xf32>
    %23 = tpu.matmul %20, %22, %cst_20 {dimension_numbers = #tpu.dot_dimension_numbers<[1], [0], [0], [1], [0, 0, 1, 1], [], []>} : vector<128x32xf32>, vector<32x32xf32>, vector<128x32xf32> -> vector<128x32xf32>
    %c1_21 = arith.constant 1 : index
    %c0_22 = arith.constant 0 : index
    %c0_23 = arith.constant 0 : index
    %24 = vector.load %arg6[%c1_21, %c0_22, %c0_23] : memref<3x1x32xf32, #tpu.memory_space<vmem>>, vector<1x1x32xf32>
    %25 = vector.shape_cast %24 : vector<1x1x32xf32> to vector<1x32xf32>
    %26 = vector.broadcast %25 : vector<1x32xf32> to vector<128x32xf32>
    %27 = arith.addf %23, %26 : vector<128x32xf32>
    %28 = vector.shape_cast %27 : vector<128x32xf32> to vector<8x16x32xf32>
    "tpu.trace_start"() <{level = 10 : i32, message = "bnm,bmh->bnh"}> : () -> ()
    %cst_24 = arith.constant dense<0.000000e+00> : vector<8x16x32xf32>
    %29 = tpu.matmul %3, %28, %cst_24 {dimension_numbers = #tpu.dot_dimension_numbers<[2], [1], [1], [2], [0, 0, 0, 1, 1, 2], [0], [0]>} : vector<8x16x16xf32>, vector<8x16x32xf32>, vector<8x16x32xf32> -> vector<8x16x32xf32>
    "tpu.trace_stop"() : () -> ()
    %cst_25 = arith.constant 0.000000e+00 : f32
    %30 = vector.broadcast %cst_25 : f32 to vector<8x16x32xf32>
    %31 = arith.maximumf %29, %30 : vector<8x16x32xf32>
    %32 = vector.shape_cast %31 : vector<8x16x32xf32> to vector<128x32xf32>
    %c2 = arith.constant 2 : index
    %c0_26 = arith.constant 0 : index
    %c0_27 = arith.constant 0 : index
    %33 = vector.load %arg5[%c2, %c0_26, %c0_27] : memref<3x32x32xf32, #tpu.memory_space<vmem>>, vector<1x32x32xf32>
    %34 = vector.shape_cast %33 : vector<1x32x32xf32> to vector<32x32xf32>
    %cst_28 = arith.constant dense<0.000000e+00> : vector<128x32xf32>
    %35 = tpu.matmul %32, %34, %cst_28 {dimension_numbers = #tpu.dot_dimension_numbers<[1], [0], [0], [1], [0, 0, 1, 1], [], []>} : vector<128x32xf32>, vector<32x32xf32>, vector<128x32xf32> -> vector<128x32xf32>
    %c2_29 = arith.constant 2 : index
    %c0_30 = arith.constant 0 : index
    %c0_31 = arith.constant 0 : index
    %36 = vector.load %arg6[%c2_29, %c0_30, %c0_31] : memref<3x1x32xf32, #tpu.memory_space<vmem>>, vector<1x1x32xf32>
    %37 = vector.shape_cast %36 : vector<1x1x32xf32> to vector<1x32xf32>
    %38 = vector.broadcast %37 : vector<1x32xf32> to vector<128x32xf32>
    %39 = arith.addf %35, %38 : vector<128x32xf32>
    %40 = vector.shape_cast %39 : vector<128x32xf32> to vector<8x16x32xf32>
    "tpu.trace_start"() <{level = 10 : i32, message = "bnm,bmh->bnh"}> : () -> ()
    %cst_32 = arith.constant dense<0.000000e+00> : vector<8x16x32xf32>
    %41 = tpu.matmul %3, %40, %cst_32 {dimension_numbers = #tpu.dot_dimension_numbers<[2], [1], [1], [2], [0, 0, 0, 1, 1, 2], [0], [0]>} : vector<8x16x16xf32>, vector<8x16x32xf32>, vector<8x16x32xf32> -> vector<8x16x32xf32>
    "tpu.trace_stop"() : () -> ()
    %cst_33 = arith.constant 0.000000e+00 : f32
    %42 = vector.broadcast %cst_33 : f32 to vector<8x16x32xf32>
    %43 = arith.maximumf %41, %42 : vector<8x16x32xf32>
    %44 = vector.shape_cast %43 : vector<8x16x32xf32> to vector<128x32xf32>
    %c0_34 = arith.constant 0 : index
    %c0_35 = arith.constant 0 : index
    %45 = vector.load %arg7[%c0_34, %c0_35] : memref<32x32xf32, #tpu.memory_space<vmem>>, vector<32x32xf32>
    %cst_36 = arith.constant dense<0.000000e+00> : vector<128x32xf32>
    %46 = tpu.matmul %44, %45, %cst_36 {dimension_numbers = #tpu.dot_dimension_numbers<[1], [0], [0], [1], [0, 0, 1, 1], [], []>} : vector<128x32xf32>, vector<32x32xf32>, vector<128x32xf32> -> vector<128x32xf32>
    %c0_37 = arith.constant 0 : index
    %c0_38 = arith.constant 0 : index
    %47 = vector.load %arg8[%c0_37, %c0_38] : memref<1x32xf32, #tpu.memory_space<vmem>>, vector<1x32xf32>
    %48 = vector.broadcast %47 : vector<1x32xf32> to vector<128x32xf32>
    %49 = arith.addf %46, %48 : vector<128x32xf32>
    %50 = vector.shape_cast %49 : vector<128x32xf32> to vector<8x16x32xf32>
    %cst_39 = arith.constant dense<0.000000e+00> : vector<8x32xf32>
    %51 = vector.multi_reduction <add>, %50, %cst_39 [1] : vector<8x16x32xf32> to vector<8x32xf32>
    %cst_40 = arith.constant 1.600000e+01 : f32
    %52 = vector.broadcast %cst_40 : f32 to vector<8x32xf32>
    %53 = arith.divf %51, %52 : vector<8x32xf32>
    %cst_41 = arith.constant 0.000000e+00 : f32
    %54 = vector.broadcast %cst_41 : f32 to vector<8x32xf32>
    %55 = arith.maximumf %53, %54 : vector<8x32xf32>
    %c0_42 = arith.constant 0 : index
    %c0_43 = arith.constant 0 : index
    %c0_44 = arith.constant 0 : index
    %56 = vector.load %arg9[%c0_42, %c0_43, %c0_44] : memref<1x32x32xf32, #tpu.memory_space<vmem>>, vector<1x32x32xf32>
    %57 = vector.shape_cast %56 : vector<1x32x32xf32> to vector<32x32xf32>
    %cst_45 = arith.constant dense<0.000000e+00> : vector<8x32xf32>
    %58 = tpu.matmul %55, %57, %cst_45 {dimension_numbers = #tpu.dot_dimension_numbers<[1], [0], [0], [1], [0, 0, 1, 1], [], []>} : vector<8x32xf32>, vector<32x32xf32>, vector<8x32xf32> -> vector<8x32xf32>
    %c0_46 = arith.constant 0 : index
    %c0_47 = arith.constant 0 : index
    %c0_48 = arith.constant 0 : index
    %59 = vector.load %arg10[%c0_46, %c0_47, %c0_48] : memref<1x1x32xf32, #tpu.memory_space<vmem>>, vector<1x1x32xf32>
    %60 = vector.shape_cast %59 : vector<1x1x32xf32> to vector<1x32xf32>
    %61 = vector.broadcast %60 : vector<1x32xf32> to vector<8x32xf32>
    %62 = arith.addf %58, %61 : vector<8x32xf32>
    %cst_49 = arith.constant 0.000000e+00 : f32
    %63 = vector.broadcast %cst_49 : f32 to vector<8x32xf32>
    %64 = arith.maximumf %62, %63 : vector<8x32xf32>
    %c0_50 = arith.constant 0 : index
    %c0_51 = arith.constant 0 : index
    %65 = vector.load %arg11[%c0_50, %c0_51] : memref<32x128xf32, #tpu.memory_space<vmem>>, vector<32x128xf32>
    %cst_52 = arith.constant dense<0.000000e+00> : vector<8x128xf32>
    %66 = tpu.matmul %64, %65, %cst_52 {dimension_numbers = #tpu.dot_dimension_numbers<[1], [0], [0], [1], [0, 0, 1, 1], [], []>} : vector<8x32xf32>, vector<32x128xf32>, vector<8x128xf32> -> vector<8x128xf32>
    %c0_53 = arith.constant 0 : index
    %c0_54 = arith.constant 0 : index
    %67 = vector.load %arg12[%c0_53, %c0_54] : memref<1x128xf32, #tpu.memory_space<vmem>>, vector<1x128xf32>
    %68 = vector.broadcast %67 : vector<1x128xf32> to vector<8x128xf32>
    %69 = arith.addf %66, %68 : vector<8x128xf32>
    %c0_55 = arith.constant 0 : index
    %c0_56 = arith.constant 0 : index
    %70 = vector.load %arg13[%c0_55, %c0_56] : memref<8x128xf32, #tpu.memory_space<vmem>>, vector<8x128xf32>
    tpu.vector_store %arg13[%c0_55, %c0_56], %69 {strides = array<i32>} : memref<8x128xf32, #tpu.memory_space<vmem>>, vector<8x128xf32>,
    return
  }
  func.func @transform_0(%arg0: i32) -> (i32, i32, i32) {
    %c0_i32 = arith.constant 0 : i32
    %c0_i32_0 = arith.constant 0 : i32
    %c0_i32_1 = arith.constant 0 : i32
    return %arg0, %c0_i32, %c0_i32_0 : i32, i32, i32
  }
  func.func @transform_1(%arg0: i32) -> (i32, i32, i32) {
    %c0_i32 = arith.constant 0 : i32
    %c0_i32_0 = arith.constant 0 : i32
    %c0_i32_1 = arith.constant 0 : i32
    return %arg0, %c0_i32, %c0_i32_0 : i32, i32, i32
  }
  func.func @transform_2(%arg0: i32) -> (i32, i32) {
    %c0_i32 = arith.constant 0 : i32
    %c0_i32_0 = arith.constant 0 : i32
    %c0_i32_1 = arith.constant 0 : i32
    return %c0_i32, %c0_i32_0 : i32, i32
  }
  func.func @transform_3(%arg0: i32) -> (i32, i32) {
    %c0_i32 = arith.constant 0 : i32
    %c0_i32_0 = arith.constant 0 : i32
    %c0_i32_1 = arith.constant 0 : i32
    return %c0_i32, %c0_i32_0 : i32, i32
  }
  func.func @transform_4(%arg0: i32) -> (i32, i32, i32) {
    %c0_i32 = arith.constant 0 : i32
    %c0_i32_0 = arith.constant 0 : i32
    %c0_i32_1 = arith.constant 0 : i32
    %c0_i32_2 = arith.constant 0 : i32
    return %c0_i32, %c0_i32_0, %c0_i32_1 : i32, i32, i32
  }
  func.func @transform_5(%arg0: i32) -> (i32, i32, i32) {
    %c0_i32 = arith.constant 0 : i32
    %c0_i32_0 = arith.constant 0 : i32
    %c0_i32_1 = arith.constant 0 : i32
    %c0_i32_2 = arith.constant 0 : i32
    return %c0_i32, %c0_i32_0, %c0_i32_1 : i32, i32, i32
  }
  func.func @transform_6(%arg0: i32) -> (i32, i32) {
    %c0_i32 = arith.constant 0 : i32
    %c0_i32_0 = arith.constant 0 : i32
    %c0_i32_1 = arith.constant 0 : i32
    return %c0_i32, %c0_i32_0 : i32, i32
  }
  func.func @transform_7(%arg0: i32) -> (i32, i32) {
    %c0_i32 = arith.constant 0 : i32
    %c0_i32_0 = arith.constant 0 : i32
    %c0_i32_1 = arith.constant 0 : i32
    return %c0_i32, %c0_i32_0 : i32, i32
  }
  func.func @transform_8(%arg0: i32) -> (i32, i32, i32) {
    %c0_i32 = arith.constant 0 : i32
    %c0_i32_0 = arith.constant 0 : i32
    %c0_i32_1 = arith.constant 0 : i32
    %c0_i32_2 = arith.constant 0 : i32
    return %c0_i32, %c0_i32_0, %c0_i32_1 : i32, i32, i32
  }
  func.func @transform_9(%arg0: i32) -> (i32, i32, i32) {
    %c0_i32 = arith.constant 0 : i32
    %c0_i32_0 = arith.constant 0 : i32
    %c0_i32_1 = arith.constant 0 : i32
    %c0_i32_2 = arith.constant 0 : i32
    return %c0_i32, %c0_i32_0, %c0_i32_1 : i32, i32, i32
  }
  func.func @transform_10(%arg0: i32) -> (i32, i32) {
    %c0_i32 = arith.constant 0 : i32
    %c0_i32_0 = arith.constant 0 : i32
    %c0_i32_1 = arith.constant 0 : i32
    return %c0_i32, %c0_i32_0 : i32, i32
  }
  func.func @transform_11(%arg0: i32) -> (i32, i32) {
    %c0_i32 = arith.constant 0 : i32
    %c0_i32_0 = arith.constant 0 : i32
    %c0_i32_1 = arith.constant 0 : i32
    return %c0_i32, %c0_i32_0 : i32, i32
  }
  func.func @transform_12(%arg0: i32) -> (i32, i32) {
    %c0_i32 = arith.constant 0 : i32
    %c0_i32_0 = arith.constant 0 : i32
    return %arg0, %c0_i32 : i32, i32
  }
}

</mosaic_0001>

<llo_original>
// kernel: tpu_custom_call.1
$region0: #{tpu_custom_call.1}
  #allocation0 [shape = 'u32[]', space=smem, size = 0x4, offset = 0x4, fixed_abs, tag = 'smem constant byte address 0x4 - core index']
  #allocation1 [shape = 'u32[72,128]{1,0:T(1,128)}', space=vmem, size = 0x9000, scoped, tag = 'internal scratch']
  %s0 = inlined_call_operand.hbm [shape: f32[24,16,28], index: 0, kind: input, shape index: {}]
  %s1 = inlined_call_operand.vmem [shape: bf16[24,16,16], index: 1, kind: input, shape index: {}]
  %s2 = inlined_call_operand.vmem [shape: f32[28,32], index: 2, kind: input, shape index: {}]
  %s3 = inlined_call_operand.vmem [shape: f32[1,32], index: 3, kind: input, shape index: {}]
  %s4 = inlined_call_operand.vmem [shape: f32[3,32,32], index: 4, kind: input, shape index: {}]
  %s5 = inlined_call_operand.vmem [shape: f32[3,1,32], index: 5, kind: input, shape index: {}]
  %s6 = inlined_call_operand.vmem [shape: f32[32,32], index: 6, kind: input, shape index: {}]
  %s7 = inlined_call_operand.vmem [shape: f32[1,32], index: 7, kind: input, shape index: {}]
  %s8 = inlined_call_operand.vmem [shape: f32[1,32,32], index: 8, kind: input, shape index: {}]
  %s9 = inlined_call_operand.vmem [shape: f32[1,1,32], index: 9, kind: input, shape index: {}]
  %s10 = inlined_call_operand.vmem [shape: f32[32,128], index: 10, kind: input, shape index: {}]
  %s11 = inlined_call_operand.vmem [shape: f32[1,128], index: 11, kind: input, shape index: {}]
  %s12 = inlined_call_operand.hbm [shape: f32[24,128], index: 12, kind: output, shape index: {}]
  %s13 = sld [smem:[#allocation0]]
  $region85: #{tpu_custom_call.1} parent=0
    _
  %s15 = ssub.s32 1, %s13
  %s16 = scalar_select 0, %s15, %s13
  $region1: #{tpu_custom_call.1} parent=0
    #allocation2 [shape = 'u8[131072]{0}', space=vmem, size = 0x20000, scoped, tag = 'input window, operand 0']
    #allocation3 [shape = 's32[2]{0}', space=sflag, size = 0x8, scoped, tag = 'scoped memory for tpu_custom_call.1']
    #allocation4 [shape = 's32[2]{0}', space=sflag, size = 0x8, scoped, tag = 'scoped memory for tpu_custom_call.1']
    #allocation5 [shape = 'u8[8192]{0}', space=vmem, size = 0x2000, scoped, tag = 'output window, operand 0']
    %17 = vsyncpa [#allocation3], 0
    %s18 = scalar_lea.sflag [#allocation3], 1
    %19 = vsyncpa %s18, 0
    %20 = vsyncpa [#allocation4], 0
    %s21 = scalar_lea.sflag [#allocation4], 1
    %22 = vsyncpa %s21, 0
    loop: start=0, step=1, limit=5
    $region2: #{tpu_custom_call.1} parent=1 // loop_pre_header
      _
    $region3: #{tpu_custom_call.1} parent=1 // loop_header
      %s24 = sphi 0, %s28
      %p25 = scmp.ge.s32.totalorder %s24, 5
      %s34 = sphi 0, %s36
      %s37 = sphi 0, %s34
      %s38 = sphi 0, %s37
      %s54 = sphi 0, %s38
      %s60 = sphi 0, %s62
      %s63 = sphi 0, %s60
      %s64 = sphi 0, %s63
      %s80 = sphi 0, %s64
      %s84 = sphi 0, %s84
      %s86 = sphi 0, %s84
      %s87 = sphi 0, %s86
      %s101 = sphi 0, %s87
      %s105 = sphi 0, %s105
      %s107 = sphi 0, %s105
      %s108 = sphi 0, %s107
      %s122 = sphi 0, %s108
      %s126 = sphi 0, %s126
      %s128 = sphi 0, %s126
      %s129 = sphi 0, %s128
      %s143 = sphi 0, %s129
      %s147 = sphi 0, %s147
      %s149 = sphi 0, %s147
      %s150 = sphi 0, %s149
      %s164 = sphi 0, %s150
      %s168 = sphi 0, %s168
      %s170 = sphi 0, %s168
      %s171 = sphi 0, %s170
      %s185 = sphi 0, %s171
      %s189 = sphi 0, %s189
      %s191 = sphi 0, %s189
      %s192 = sphi 0, %s191
      %s206 = sphi 0, %s192
      %s210 = sphi 0, %s210
      %s212 = sphi 0, %s210
      %s213 = sphi 0, %s212
      %s227 = sphi 0, %s213
      %s231 = sphi 0, %s231
      %s233 = sphi 0, %s231
      %s234 = sphi 0, %s233
      %s248 = sphi 0, %s234
      %s252 = sphi 0, %s252
      %s254 = sphi 0, %s252
      %s255 = sphi 0, %s254
      %s269 = sphi 0, %s255
      %s273 = sphi 0, %s273
      %s275 = sphi 0, %s273
      %s276 = sphi 0, %s275
      %s290 = sphi 0, %s276
      %s296 = sphi 0, %s298
      %s299 = sphi 0, %s296
      %s300 = sphi 0, %s299
      %s316 = sphi 0, %s300
    $region4: #{tpu_custom_call.1} parent=1 // loop_header_branch
      %27 = sbr.rel (%p25) target = $region8
    $region5: #{tpu_custom_call.1} parent=1 // loop_body
      %s29 = ssub.s32 %s24, 1
      %s30 = ssub.s32 %s24, 2
      %s31 = sadd.s32 %s24, 1
      %s32 = ssub.s32 %s24, %s31
      %p33 = scmp.eq.s32.totalorder %s32, 0
      %s35 = sadd.s32 %s34, 1
      %s36 = scalar_select %p33, %s34, %s35
      %p39 = pneg %p33
      %p40 = scmp.eq.s32.totalorder %s24, 2
      %p41 = por %p39, %p40
      %p42 = scmp.ne.s32.totalorder %s34, %s37
      %p43 = scmp.eq.s32.totalorder %s24, 0
      %p44 = por %p42, %p43
      %p45 = scmp.ne.s32.totalorder %s34, %s37
      %p46 = scmp.eq.s32.totalorder %s29, 2
      %p47 = por %p45, %p46
      %p48 = scmp.ne.s32.totalorder %s37, %s38
      %p49 = scmp.eq.s32.totalorder %s29, 0
      %p50 = por %p48, %p49
      %p51 = scmp.ne.s32.totalorder %s37, %s38
      %p52 = scmp.eq.s32.totalorder %s30, 2
      %p53 = por %p51, %p52
      %p55 = scmp.ne.s32.totalorder %s38, %s54
      %p56 = scmp.eq.s32.totalorder %s30, 0
      %p57 = por %p55, %p56
      %s58 = ssub.s32 %s24, %s31
      %p59 = scmp.eq.s32.totalorder %s58, 0
      %s61 = sadd.s32 %s60, 1
      %s62 = scalar_select %p59, %s60, %s61
      %p65 = pneg %p59
      %p66 = scmp.eq.s32.totalorder %s24, 2
      %p67 = por %p65, %p66
      %p68 = scmp.ne.s32.totalorder %s60, %s63
      %p69 = scmp.eq.s32.totalorder %s24, 0
      %p70 = por %p68, %p69
      %p71 = scmp.ne.s32.totalorder %s60, %s63
      %p72 = scmp.eq.s32.totalorder %s29, 2
      %p73 = por %p71, %p72
      %p74 = scmp.ne.s32.totalorder %s63, %s64
      %p75 = scmp.eq.s32.totalorder %s29, 0
      %p76 = por %p74, %p75
      %p77 = scmp.ne.s32.totalorder %s63, %s64
      %p78 = scmp.eq.s32.totalorder %s30, 2
      %p79 = por %p77, %p78
      %p81 = scmp.ne.s32.totalorder %s64, %s80
      %p82 = scmp.eq.s32.totalorder %s30, 0
      %p83 = por %p81, %p82
      %s85 = sadd.s32 %s84, 1
      %p88 = scmp.eq.s32.totalorder %s24, 2
      %p89 = scmp.ne.s32.totalorder %s84, %s86
      %p90 = scmp.eq.s32.totalorder %s24, 0
      %p91 = por %p89, %p90
      %p92 = scmp.ne.s32.totalorder %s84, %s86
      %p93 = scmp.eq.s32.totalorder %s29, 2
      %p94 = por %p92, %p93
      %p95 = scmp.ne.s32.totalorder %s86, %s87
      %p96 = scmp.eq.s32.totalorder %s29, 0
      %p97 = por %p95, %p96
      %p98 = scmp.ne.s32.totalorder %s86, %s87
      %p99 = scmp.eq.s32.totalorder %s30, 2
      %p100 = por %p98, %p99
      %p102 = scmp.ne.s32.totalorder %s87, %s101
      %p103 = scmp.eq.s32.totalorder %s30, 0
      %p104 = por %p102, %p103
      %s106 = sadd.s32 %s105, 1
      %p109 = scmp.eq.s32.totalorder %s24, 2
      %p110 = scmp.ne.s32.totalorder %s105, %s107
      %p111 = scmp.eq.s32.totalorder %s24, 0
      %p112 = por %p110, %p111
      %p113 = scmp.ne.s32.totalorder %s105, %s107
      %p114 = scmp.eq.s32.totalorder %s29, 2
      %p115 = por %p113, %p114
      %p116 = scmp.ne.s32.totalorder %s107, %s108
      %p117 = scmp.eq.s32.totalorder %s29, 0
      %p118 = por %p116, %p117
      %p119 = scmp.ne.s32.totalorder %s107, %s108
      %p120 = scmp.eq.s32.totalorder %s30, 2
      %p121 = por %p119, %p120
      %p123 = scmp.ne.s32.totalorder %s108, %s122
      %p124 = scmp.eq.s32.totalorder %s30, 0
      %p125 = por %p123, %p124
      %s127 = sadd.s32 %s126, 1
      %p130 = scmp.eq.s32.totalorder %s24, 2
      %p131 = scmp.ne.s32.totalorder %s126, %s128
      %p132 = scmp.eq.s32.totalorder %s24, 0
      %p133 = por %p131, %p132
      %p134 = scmp.ne.s32.totalorder %s126, %s128
      %p135 = scmp.eq.s32.totalorder %s29, 2
      %p136 = por %p134, %p135
      %p137 = scmp.ne.s32.totalorder %s128, %s129
      %p138 = scmp.eq.s32.totalorder %s29, 0
      %p139 = por %p137, %p138
      %p140 = scmp.ne.s32.totalorder %s128, %s129
      %p141 = scmp.eq.s32.totalorder %s30, 2
      %p142 = por %p140, %p141
      %p144 = scmp.ne.s32.totalorder %s129, %s143
      %p145 = scmp.eq.s32.totalorder %s30, 0
      %p146 = por %p144, %p145
      %s148 = sadd.s32 %s147, 1
      %p151 = scmp.eq.s32.totalorder %s24, 2
      %p152 = scmp.ne.s32.totalorder %s147, %s149
      %p153 = scmp.eq.s32.totalorder %s24, 0
      %p154 = por %p152, %p153
      %p155 = scmp.ne.s32.totalorder %s147, %s149
      %p156 = scmp.eq.s32.totalorder %s29, 2
      %p157 = por %p155, %p156
      %p158 = scmp.ne.s32.totalorder %s149, %s150
      %p159 = scmp.eq.s32.totalorder %s29, 0
      %p160 = por %p158, %p159
      %p161 = scmp.ne.s32.totalorder %s149, %s150
      %p162 = scmp.eq.s32.totalorder %s30, 2
      %p163 = por %p161, %p162
      %p165 = scmp.ne.s32.totalorder %s150, %s164
      %p166 = scmp.eq.s32.totalorder %s30, 0
      %p167 = por %p165, %p166
      %s169 = sadd.s32 %s168, 1
      %p172 = scmp.eq.s32.totalorder %s24, 2
      %p173 = scmp.ne.s32.totalorder %s168, %s170
      %p174 = scmp.eq.s32.totalorder %s24, 0
      %p175 = por %p173, %p174
      %p176 = scmp.ne.s32.totalorder %s168, %s170
      %p177 = scmp.eq.s32.totalorder %s29, 2
      %p178 = por %p176, %p177
      %p179 = scmp.ne.s32.totalorder %s170, %s171
      %p180 = scmp.eq.s32.totalorder %s29, 0
      %p181 = por %p179, %p180
      %p182 = scmp.ne.s32.totalorder %s170, %s171
      %p183 = scmp.eq.s32.totalorder %s30, 2
      %p184 = por %p182, %p183
      %p186 = scmp.ne.s32.totalorder %s171, %s185
      %p187 = scmp.eq.s32.totalorder %s30, 0
      %p188 = por %p186, %p187
      %s190 = sadd.s32 %s189, 1
      %p193 = scmp.eq.s32.totalorder %s24, 2
      %p194 = scmp.ne.s32.totalorder %s189, %s191
      %p195 = scmp.eq.s32.totalorder %s24, 0
      %p196 = por %p194, %p195
      %p197 = scmp.ne.s32.totalorder %s189, %s191
      %p198 = scmp.eq.s32.totalorder %s29, 2
      %p199 = por %p197, %p198
      %p200 = scmp.ne.s32.totalorder %s191, %s192
      %p201 = scmp.eq.s32.totalorder %s29, 0
      %p202 = por %p200, %p201
      %p203 = scmp.ne.s32.totalorder %s191, %s192
      %p204 = scmp.eq.s32.totalorder %s30, 2
      %p205 = por %p203, %p204
      %p207 = scmp.ne.s32.totalorder %s192, %s206
      %p208 = scmp.eq.s32.totalorder %s30, 0
      %p209 = por %p207, %p208
      %s211 = sadd.s32 %s210, 1
      %p214 = scmp.eq.s32.totalorder %s24, 2
      %p215 = scmp.ne.s32.totalorder %s210, %s212
      %p216 = scmp.eq.s32.totalorder %s24, 0
      %p217 = por %p215, %p216
      %p218 = scmp.ne.s32.totalorder %s210, %s212
      %p219 = scmp.eq.s32.totalorder %s29, 2
      %p220 = por %p218, %p219
      %p221 = scmp.ne.s32.totalorder %s212, %s213
      %p222 = scmp.eq.s32.totalorder %s29, 0
      %p223 = por %p221, %p222
      %p224 = scmp.ne.s32.totalorder %s212, %s213
      %p225 = scmp.eq.s32.totalorder %s30, 2
      %p226 = por %p224, %p225
      %p228 = scmp.ne.s32.totalorder %s213, %s227
      %p229 = scmp.eq.s32.totalorder %s30, 0
      %p230 = por %p228, %p229
      %s232 = sadd.s32 %s231, 1
      %p235 = scmp.eq.s32.totalorder %s24, 2
      %p236 = scmp.ne.s32.totalorder %s231, %s233
      %p237 = scmp.eq.s32.totalorder %s24, 0
      %p238 = por %p236, %p237
      %p239 = scmp.ne.s32.totalorder %s231, %s233
      %p240 = scmp.eq.s32.totalorder %s29, 2
      %p241 = por %p239, %p240
      %p242 = scmp.ne.s32.totalorder %s233, %s234
      %p243 = scmp.eq.s32.totalorder %s29, 0
      %p244 = por %p242, %p243
      %p245 = scmp.ne.s32.totalorder %s233, %s234
      %p246 = scmp.eq.s32.totalorder %s30, 2
      %p247 = por %p245, %p246
      %p249 = scmp.ne.s32.totalorder %s234, %s248
      %p250 = scmp.eq.s32.totalorder %s30, 0
      %p251 = por %p249, %p250
      %s253 = sadd.s32 %s252, 1
      %p256 = scmp.eq.s32.totalorder %s24, 2
      %p257 = scmp.ne.s32.totalorder %s252, %s254
      %p258 = scmp.eq.s32.totalorder %s24, 0
      %p259 = por %p257, %p258
      %p260 = scmp.ne.s32.totalorder %s252, %s254
      %p261 = scmp.eq.s32.totalorder %s29, 2
      %p262 = por %p260, %p261
      %p263 = scmp.ne.s32.totalorder %s254, %s255
      %p264 = scmp.eq.s32.totalorder %s29, 0
      %p265 = por %p263, %p264
      %p266 = scmp.ne.s32.totalorder %s254, %s255
      %p267 = scmp.eq.s32.totalorder %s30, 2
      %p268 = por %p266, %p267
      %p270 = scmp.ne.s32.totalorder %s255, %s269
      %p271 = scmp.eq.s32.totalorder %s30, 0
      %p272 = por %p270, %p271
      %s274 = sadd.s32 %s273, 1
      %p277 = scmp.eq.s32.totalorder %s24, 2
      %p278 = scmp.ne.s32.totalorder %s273, %s275
      %p279 = scmp.eq.s32.totalorder %s24, 0
      %p280 = por %p278, %p279
      %p281 = scmp.ne.s32.totalorder %s273, %s275
      %p282 = scmp.eq.s32.totalorder %s29, 2
      %p283 = por %p281, %p282
      %p284 = scmp.ne.s32.totalorder %s275, %s276
      %p285 = scmp.eq.s32.totalorder %s29, 0
      %p286 = por %p284, %p285
      %p287 = scmp.ne.s32.totalorder %s275, %s276
      %p288 = scmp.eq.s32.totalorder %s30, 2
      %p289 = por %p287, %p288
      %p291 = scmp.ne.s32.totalorder %s276, %s290
      %p292 = scmp.eq.s32.totalorder %s30, 0
      %p293 = por %p291, %p292
      %s294 = ssub.s32 %s24, %s31
      %p295 = scmp.eq.s32.totalorder %s294, 0
      %s297 = sadd.s32 %s296, 1
      %s298 = scalar_select %p295, %s296, %s297
      %p301 = pneg %p295
      %p302 = scmp.eq.s32.totalorder %s24, 2
      %p303 = por %p301, %p302
      %p304 = scmp.ne.s32.totalorder %s296, %s299
      %p305 = scmp.eq.s32.totalorder %s24, 0
      %p306 = por %p304, %p305
      %p307 = scmp.ne.s32.totalorder %s296, %s299
      %p308 = scmp.eq.s32.totalorder %s29, 2
      %p309 = por %p307, %p308
      %p310 = scmp.ne.s32.totalorder %s299, %s300
      %p311 = scmp.eq.s32.totalorder %s29, 0
      %p312 = por %p310, %p311
      %p313 = scmp.ne.s32.totalorder %s299, %s300
      %p314 = scmp.eq.s32.totalorder %s30, 2
      %p315 = por %p313, %p314
      %p317 = scmp.ne.s32.totalorder %s300, %s316
      %p318 = scmp.eq.s32.totalorder %s30, 0
      %p319 = por %p317, %p318
      %p320 = scmp.le.s32.totalorder 1, %s24
      %p321 = scmp.lt.s32.totalorder %s24, 4
      %p322 = pnand %p320, %p321
      %p323 = pneg %p322
      // Predicated region
      $region9: #{tpu_custom_call.1} parent=5 // pred_check
        _
      $region10: #{tpu_custom_call.1} parent=5 // pred_check_branch
        %325 = sbr.rel (%p322) target = $region12
      $region11: #{tpu_custom_call.1} parent=5 // pred_region
        %s326 = ssub.s32 %s24, 1
        // Predicated region
        $region13: #{tpu_custom_call.1} parent=11 // pred_check
          %p327 = pneg %p97
        $region14: #{tpu_custom_call.1} parent=11 // pred_check_branch
          %329 = sbr.rel (%p327) target = $region16
        $region15: #{tpu_custom_call.1} parent=11 // pred_region
          _
        $region16: #{tpu_custom_call.1} parent=11 // pred_fallthru
          _
        // Predicated region
        $region17: #{tpu_custom_call.1} parent=11 // pred_check
          %p330 = pneg %p118
        $region18: #{tpu_custom_call.1} parent=11 // pred_check_branch
          %332 = sbr.rel (%p330) target = $region20
        $region19: #{tpu_custom_call.1} parent=11 // pred_region
          _
        $region20: #{tpu_custom_call.1} parent=11 // pred_fallthru
          _
        // Predicated region
        $region21: #{tpu_custom_call.1} parent=11 // pred_check
          %p333 = pneg %p139
        $region22: #{tpu_custom_call.1} parent=11 // pred_check_branch
          %335 = sbr.rel (%p333) target = $region24
        $region23: #{tpu_custom_call.1} parent=11 // pred_region
          _
        $region24: #{tpu_custom_call.1} parent=11 // pred_fallthru
          _
        // Predicated region
        $region25: #{tpu_custom_call.1} parent=11 // pred_check
          %p336 = pneg %p160
        $region26: #{tpu_custom_call.1} parent=11 // pred_check_branch
          %338 = sbr.rel (%p336) target = $region28
        $region27: #{tpu_custom_call.1} parent=11 // pred_region
          _
        $region28: #{tpu_custom_call.1} parent=11 // pred_fallthru
          _
        // Predicated region
        $region29: #{tpu_custom_call.1} parent=11 // pred_check
          %p339 = pneg %p181
        $region30: #{tpu_custom_call.1} parent=11 // pred_check_branch
          %341 = sbr.rel (%p339) target = $region32
        $region31: #{tpu_custom_call.1} parent=11 // pred_region
          _
        $region32: #{tpu_custom_call.1} parent=11 // pred_fallthru
          _
        // Predicated region
        $region33: #{tpu_custom_call.1} parent=11 // pred_check
          %p342 = pneg %p202
        $region34: #{tpu_custom_call.1} parent=11 // pred_check_branch
          %344 = sbr.rel (%p342) target = $region36
        $region35: #{tpu_custom_call.1} parent=11 // pred_region
          _
        $region36: #{tpu_custom_call.1} parent=11 // pred_fallthru
          _
        // Predicated region
        $region37: #{tpu_custom_call.1} parent=11 // pred_check
          %p345 = pneg %p223
        $region38: #{tpu_custom_call.1} parent=11 // pred_check_branch
          %347 = sbr.rel (%p345) target = $region40
        $region39: #{tpu_custom_call.1} parent=11 // pred_region
          _
        $region40: #{tpu_custom_call.1} parent=11 // pred_fallthru
          _
        // Predicated region
        $region41: #{tpu_custom_call.1} parent=11 // pred_check
          %p348 = pneg %p244
        $region42: #{tpu_custom_call.1} parent=11 // pred_check_branch
          %350 = sbr.rel (%p348) target = $region44
        $region43: #{tpu_custom_call.1} parent=11 // pred_region
          _
        $region44: #{tpu_custom_call.1} parent=11 // pred_fallthru
          _
        // Predicated region
        $region45: #{tpu_custom_call.1} parent=11 // pred_check
          %p351 = pneg %p265
        $region46: #{tpu_custom_call.1} parent=11 // pred_check_branch
          %353 = sbr.rel (%p351) target = $region48
        $region47: #{tpu_custom_call.1} parent=11 // pred_region
          _
        $region48: #{tpu_custom_call.1} parent=11 // pred_fallthru
          _
        // Predicated region
        $region49: #{tpu_custom_call.1} parent=11 // pred_check
          %p354 = pneg %p286
        $region50: #{tpu_custom_call.1} parent=11 // pred_check_branch
          %356 = sbr.rel (%p354) target = $region52
        $region51: #{tpu_custom_call.1} parent=11 // pred_region
          _
        $region52: #{tpu_custom_call.1} parent=11 // pred_fallthru
          _
      $region12: #{tpu_custom_call.1} parent=5 // pred_fallthru
        _
      %p357 = scmp.lt.s32.totalorder %s24, 3
      // Predicated region
      $region53: #{tpu_custom_call.1} parent=5 // pred_check
        %p358 = pneg %p357
      $region54: #{tpu_custom_call.1} parent=5 // pred_check_branch
        %360 = sbr.rel (%p358) target = $region56
      $region55: #{tpu_custom_call.1} parent=5 // pred_region
        // Predicated region
        $region57: #{tpu_custom_call.1} parent=55 // pred_check
          %p361 = pneg %p44
        $region58: #{tpu_custom_call.1} parent=55 // pred_check_branch
          %363 = sbr.rel (%p361) target = $region60
        $region59: #{tpu_custom_call.1} parent=55 // pred_region
          %s364 = sand.u32 %s34, 1
          %s365 = scalar_lea.sflag [#allocation3], %s364
          %s366 = sand.u32 %s34, 1
          %s367 = smul.addr %s366, 128
          %s368 = scalar_lea.vmem [#allocation2], %s367
          %s369 = smul.u32 8, %s24
          %371 = vsyncadd %s365, 0
          %s372 = smul.addr %s369, 2
          %s373 = smul.addr %s372, 8
          %s374 = scalar_lea.hbm %s0, %s373
          %s375 = sshll.u32 %s374, 4
          %s376 = int_to_ptr.hbm [resolvable:$true] %s375
          %s377 = sshll.u32 %s368, 4
          %s378 = int_to_ptr.vmem [resolvable:$true] %s377
          %383 = dma.hbm_to_vmem [thread:$0]  %s376, 2048, %s378, %s365, 128, 128, 8
        $region60: #{tpu_custom_call.1} parent=55 // pred_fallthru
          _
        // Predicated region
        $region61: #{tpu_custom_call.1} parent=55 // pred_check
          %p384 = pneg %p70
        $region62: #{tpu_custom_call.1} parent=55 // pred_check_branch
          %386 = sbr.rel (%p384) target = $region64
        $region63: #{tpu_custom_call.1} parent=55 // pred_region
          %s387 = smul.u32 8, %s24
          %p388 = scmp.lt.s32.totalorder %s387, 23
          %s389 = scalar_select %p388, %s387, 23
          %s390 = smul.addr %s389, 2
          %s391 = smul.addr %s390, 4
          %s392 = scalar_lea.vmem %s1, %s391
          %s393 = smul.u32 8, %s24
        $region64: #{tpu_custom_call.1} parent=55 // pred_fallthru
          _
      $region56: #{tpu_custom_call.1} parent=5 // pred_fallthru
        _
      %p394 = scmp.le.s32.totalorder 1, %s24
      %p395 = scmp.lt.s32.totalorder %s24, 4
      %p396 = pnand %p394, %p395
      %p397 = pneg %p396
      // Predicated region
      $region65: #{tpu_custom_call.1} parent=5 // pred_check
        _
      $region66: #{tpu_custom_call.1} parent=5 // pred_check_branch
        %399 = sbr.rel (%p396) target = $region68
      $region67: #{tpu_custom_call.1} parent=5 // pred_region
        %s400 = ssub.s32 %s24, 1
        %s401 = sand.u32 %s37, 1
        %s402 = scalar_lea.sflag [#allocation3], %s401
        %s403 = sand.u32 %s37, 1
        %s404 = smul.addr %s403, 128
        %s405 = scalar_lea.vmem [#allocation2], %s404
        // Predicated region
        $region69: #{tpu_custom_call.1} parent=67 // pred_check
          %p406 = pneg %p50
        $region70: #{tpu_custom_call.1} parent=67 // pred_check_branch
          %408 = sbr.rel (%p406) target = $region72
        $region71: #{tpu_custom_call.1} parent=67 // pred_region
          %410 = dma.done %s402, 2048
        $region72: #{tpu_custom_call.1} parent=67 // pred_fallthru
          _
        %s411 = sand.u32 %s37, 1
        %s412 = scalar_lea.sflag [#allocation3], %s411
        %s413 = sand.u32 %s37, 1
        %s414 = smul.addr %s413, 128
        %s415 = scalar_lea.vmem [#allocation2], %s414
        %p416 = pneg %p50
        %p417 = pneg %p47
        %s418 = smul.u32 8, %s29
        %p419 = scmp.lt.s32.totalorder %s418, 23
        %s420 = scalar_select %p419, %s418, 23
        %s421 = smul.addr %s420, 2
        %s422 = smul.addr %s421, 4
        %s423 = scalar_lea.vmem %s1, %s422
        %p424 = pneg %p76
        %p425 = pneg %p73
        %p426 = pneg %p97
        %p427 = pneg %p94
        %p428 = pneg %p118
        %p429 = pneg %p115
        %p430 = pneg %p139
        %p431 = pneg %p136
        %p432 = pneg %p160
        %p433 = pneg %p157
        %p434 = pneg %p181
        %p435 = pneg %p178
        %p436 = pneg %p202
        %p437 = pneg %p199
        %p438 = pneg %p223
        %p439 = pneg %p220
        %p440 = pneg %p244
        %p441 = pneg %p241
        %p442 = pneg %p265
        %p443 = pneg %p262
        %p444 = pneg %p286
        %p445 = pneg %p283
        %p446 = pneg %p312
        %p447 = pneg %p309
        %s448 = sand.u32 %s299, 1
        %s449 = scalar_lea.sflag [#allocation4], %s448
        %s450 = sand.u32 %s299, 1
        %s451 = smul.addr %s450, 8
        %s452 = scalar_lea.vmem [#allocation5], %s451
        %s453 = smul.u32 8, %s29
        %s454 = smul.u32 8, %s29
        %p455 = scmp.lt.s32.totalorder %s454, 23
        %s456 = scalar_select %p455, %s454, 23
        %s457 = smul.addr %s456, 2
        %s458 = smul.addr %s457, 4
        %s459 = scalar_lea.vmem %s1, %s458
        %s460 = smul.u32 8, %s29
        %v461 = vld [vmem:[%s405] sm:$0xff]
        %v462 = vld [vmem:[%s405 + $0x8] sm:$0xff]
        %v463 = vld [vmem:[%s405 + $0x10] sm:$0xff]
        %v464 = vld [vmem:[%s405 + $0x18] sm:$0xff]
        %v465 = vld [vmem:[%s405 + $0x20] sm:$0xff]
        %v466 = vld [vmem:[%s405 + $0x28] sm:$0xff]
        %v467 = vld [vmem:[%s405 + $0x30] sm:$0xff]
        %v468 = vld [vmem:[%s405 + $0x38] sm:$0xff]
        %v469 = vld [vmem:[%s405 + $0x40] sm:$0xff]
        %v470 = vld [vmem:[%s405 + $0x48] sm:$0xff]
        %v471 = vld [vmem:[%s405 + $0x50] sm:$0xff]
        %v472 = vld [vmem:[%s405 + $0x58] sm:$0xff]
        %v473 = vld [vmem:[%s405 + $0x60] sm:$0xff]
        %v474 = vld [vmem:[%s405 + $0x68] sm:$0xff]
        %v475 = vld [vmem:[%s405 + $0x70] sm:$0xff]
        %v476 = vld [vmem:[%s405 + $0x78] sm:$0xff]
        %v477 = vld [vmem:[%s459] sm:$0xf]
        %v478 = vld [vmem:[%s459 + $0x4] sm:$0xf]
        %v479 = vld [vmem:[%s459 + $0x8] sm:$0xf]
        %v480 = vld [vmem:[%s459 + $0xc] sm:$0xf]
        %v481 = vld [vmem:[%s459 + $0x10] sm:$0xf]
        %v482 = vld [vmem:[%s459 + $0x14] sm:$0xf]
        %v483 = vld [vmem:[%s459 + $0x18] sm:$0xf]
        %v484 = vld [vmem:[%s459 + $0x1c] sm:$0xf]
        %v485 = vld [vmem:[%s459 + $0x20] sm:$0xf]
        %v486 = vld [vmem:[%s459 + $0x24] sm:$0xf]
        %v487 = vld [vmem:[%s459 + $0x28] sm:$0xf]
        %v488 = vld [vmem:[%s459 + $0x2c] sm:$0xf]
        %v489 = vld [vmem:[%s459 + $0x30] sm:$0xf]
        %v490 = vld [vmem:[%s459 + $0x34] sm:$0xf]
        %v491 = vld [vmem:[%s459 + $0x38] sm:$0xf]
        %v492 = vld [vmem:[%s459 + $0x3c] sm:$0xf]
        %v493 = vunpack.c.l.bf16 %v477
        %v494 = vunpack.c.l.bf16 %v478
        %v495 = vunpack.c.l.bf16 %v479
        %v496 = vunpack.c.l.bf16 %v480
        %v497 = vunpack.c.l.bf16 %v481
        %v498 = vunpack.c.l.bf16 %v482
        %v499 = vunpack.c.l.bf16 %v483
        %v500 = vunpack.c.l.bf16 %v484
        %v501 = vunpack.c.l.bf16 %v485
        %v502 = vunpack.c.l.bf16 %v486
        %v503 = vunpack.c.l.bf16 %v487
        %v504 = vunpack.c.l.bf16 %v488
        %v505 = vunpack.c.l.bf16 %v489
        %v506 = vunpack.c.l.bf16 %v490
        %v507 = vunpack.c.l.bf16 %v491
        %v508 = vunpack.c.l.bf16 %v492
        %v509 = vld [vmem:[%s2] sm:$0xff]
        %v510 = vld [vmem:[%s2 + $0x8] sm:$0xff]
        %v511 = vld [vmem:[%s2 + $0x10] sm:$0xff]
        %v512 = vld [vmem:[%s2 + $0x18] sm:$0xf]
        %v513 = vld [vmem:[%s3] sm:$0x1]
        %v515 = vperm.slane %v513, 0
        %vm517 = vcmask 228352
        %v519 = vsel %vm517, %v461, 0
        %v522 = vsel %vm517, %v462, 0
        %v525 = vsel %vm517, %v463, 0
        %v528 = vsel %vm517, %v464, 0
        %v531 = vsel %vm517, %v465, 0
        %v534 = vsel %vm517, %v466, 0
        %v537 = vsel %vm517, %v467, 0
        %v540 = vsel %vm517, %v468, 0
        %v543 = vsel %vm517, %v469, 0
        %v546 = vsel %vm517, %v470, 0
        %v549 = vsel %vm517, %v471, 0
        %v552 = vsel %vm517, %v472, 0
        %v555 = vsel %vm517, %v473, 0
        %v558 = vsel %vm517, %v474, 0
        %v561 = vsel %vm517, %v475, 0
        %v564 = vsel %vm517, %v476, 0
        %vm566 = vcmask 1043456
        %v568 = vsel %vm566, %v512, 0
        %570 = vmatpush.msra.mxu0 0.0
        %571 = vmatpush.msra.mxu0 0.0
        %572 = vmatpush.msra.mxu0 0.0
        %573 = vmatpush.msra.mxu0 0.0
        %574 = vmatpush.msra.mxu0 0.0
        %575 = vmatpush.msra.mxu0 0.0
        %576 = vmatpush.msra.mxu0 0.0
        %577 = vmatpush.msra.mxu0 0.0
        %578 = vmatpush.msra.mxu0 0.0
        %579 = vmatpush.msra.mxu0 0.0
        %580 = vmatpush.msra.mxu0 0.0
        %581 = vmatpush.msra.mxu0 0.0
        %582 = vmatpush.msra.mxu0 %v568
        %583 = vmatpush.msra.mxu0 %v511
        %584 = vmatpush.msra.mxu0 %v510
        %585 = vmatpush.msra.mxu0 %v509
        %586 = vmatmul.f32.gmra.mxu0 %v519
        %v587 = vpop.f32.mrf.mxu0
        %v588 = vadd.f32 %v515, %v587
        %589 = vmatmul.f32.gmra.mxu0 %v522
        %v590 = vpop.f32.mrf.mxu0
        %v591 = vadd.f32 %v515, %v590
        %592 = vmatmul.f32.gmra.mxu0 %v525
        %v593 = vpop.f32.mrf.mxu0
        %v594 = vadd.f32 %v515, %v593
        %595 = vmatmul.f32.gmra.mxu0 %v528
        %v596 = vpop.f32.mrf.mxu0
        %v597 = vadd.f32 %v515, %v596
        %598 = vmatmul.f32.gmra.mxu0 %v531
        %v599 = vpop.f32.mrf.mxu0
        %v600 = vadd.f32 %v515, %v599
        %601 = vmatmul.f32.gmra.mxu0 %v534
        %v602 = vpop.f32.mrf.mxu0
        %v603 = vadd.f32 %v515, %v602
        %604 = vmatmul.f32.gmra.mxu0 %v537
        %v605 = vpop.f32.mrf.mxu0
        %v606 = vadd.f32 %v515, %v605
        %607 = vmatmul.f32.gmra.mxu0 %v540
        %v608 = vpop.f32.mrf.mxu0
        %v609 = vadd.f32 %v515, %v608
        %610 = vmatmul.f32.gmra.mxu0 %v543
        %v611 = vpop.f32.mrf.mxu0
        %v612 = vadd.f32 %v515, %v611
        %613 = vmatmul.f32.gmra.mxu0 %v546
        %v614 = vpop.f32.mrf.mxu0
        %v615 = vadd.f32 %v515, %v614
        %616 = vmatmul.f32.gmra.mxu0 %v549
        %v617 = vpop.f32.mrf.mxu0
        %v618 = vadd.f32 %v515, %v617
        %619 = vmatmul.f32.gmra.mxu0 %v552
        %v620 = vpop.f32.mrf.mxu0
        %v621 = vadd.f32 %v515, %v620
        %622 = vmatmul.f32.gmra.mxu0 %v555
        %v623 = vpop.f32.mrf.mxu0
        %v624 = vadd.f32 %v515, %v623
        %625 = vmatmul.f32.gmra.mxu0 %v558
        %v626 = vpop.f32.mrf.mxu0
        %v627 = vadd.f32 %v515, %v626
        %628 = vmatmul.f32.gmra.mxu0 %v561
        %v629 = vpop.f32.mrf.mxu0
        %v630 = vadd.f32 %v515, %v629
        %631 = vmatmul.f32.gmra.mxu0 %v564
        %v632 = vpop.f32.mrf.mxu0
        %v633 = vadd.f32 %v515, %v632
        %634 = vdwg.mxu0
        %v635 = vld [vmem:[%s4] sm:$0xff]
        %v636 = vld [vmem:[%s4 + $0x8] sm:$0xff]
        %v637 = vld [vmem:[%s4 + $0x10] sm:$0xff]
        %v638 = vld [vmem:[%s4 + $0x18] sm:$0xff]
        %v639 = vld [vmem:[%s5] sm:$0x1]
        %v641 = vperm.slane %v639, 0
        %vm643 = vcmask 261120
        %v645 = vsel %vm643, %v588, 0
        %v648 = vsel %vm643, %v591, 0
        %v651 = vsel %vm643, %v594, 0
        %v654 = vsel %vm643, %v597, 0
        %v657 = vsel %vm643, %v600, 0
        %v660 = vsel %vm643, %v603, 0
        %v663 = vsel %vm643, %v606, 0
        %v666 = vsel %vm643, %v609, 0
        %v669 = vsel %vm643, %v612, 0
        %v672 = vsel %vm643, %v615, 0
        %v675 = vsel %vm643, %v618, 0
        %v678 = vsel %vm643, %v621, 0
        %v681 = vsel %vm643, %v624, 0
        %v684 = vsel %vm643, %v627, 0
        %v687 = vsel %vm643, %v630, 0
        %v690 = vsel %vm643, %v633, 0
        %692 = vmatpush.msra.mxu0 0.0
        %693 = vmatpush.msra.mxu0 0.0
        %694 = vmatpush.msra.mxu0 0.0
        %695 = vmatpush.msra.mxu0 0.0
        %696 = vmatpush.msra.mxu0 0.0
        %697 = vmatpush.msra.mxu0 0.0
        %698 = vmatpush.msra.mxu0 0.0
        %699 = vmatpush.msra.mxu0 0.0
        %700 = vmatpush.msra.mxu0 0.0
        %701 = vmatpush.msra.mxu0 0.0
        %702 = vmatpush.msra.mxu0 0.0
        %703 = vmatpush.msra.mxu0 0.0
        %704 = vmatpush.msra.mxu0 %v638
        %705 = vmatpush.msra.mxu0 %v637
        %706 = vmatpush.msra.mxu0 %v636
        %707 = vmatpush.msra.mxu0 %v635
        %708 = vmatmul.f32.gmra.mxu0 %v645
        %v709 = vpop.f32.mrf.mxu0
        %v710 = vadd.f32 %v641, %v709
        %711 = vmatmul.f32.gmra.mxu0 %v648
        %v712 = vpop.f32.mrf.mxu0
        %v713 = vadd.f32 %v641, %v712
        %714 = vmatmul.f32.gmra.mxu0 %v651
        %v715 = vpop.f32.mrf.mxu0
        %v716 = vadd.f32 %v641, %v715
        %717 = vmatmul.f32.gmra.mxu0 %v654
        %v718 = vpop.f32.mrf.mxu0
        %v719 = vadd.f32 %v641, %v718
        %720 = vmatmul.f32.gmra.mxu0 %v657
        %v721 = vpop.f32.mrf.mxu0
        %v722 = vadd.f32 %v641, %v721
        %723 = vmatmul.f32.gmra.mxu0 %v660
        %v724 = vpop.f32.mrf.mxu0
        %v725 = vadd.f32 %v641, %v724
        %726 = vmatmul.f32.gmra.mxu0 %v663
        %v727 = vpop.f32.mrf.mxu0
        %v728 = vadd.f32 %v641, %v727
        %729 = vmatmul.f32.gmra.mxu0 %v666
        %v730 = vpop.f32.mrf.mxu0
        %v731 = vadd.f32 %v641, %v730
        %732 = vmatmul.f32.gmra.mxu0 %v669
        %v733 = vpop.f32.mrf.mxu0
        %v734 = vadd.f32 %v641, %v733
        %735 = vmatmul.f32.gmra.mxu0 %v672
        %v736 = vpop.f32.mrf.mxu0
        %v737 = vadd.f32 %v641, %v736
        %738 = vmatmul.f32.gmra.mxu0 %v675
        %v739 = vpop.f32.mrf.mxu0
        %v740 = vadd.f32 %v641, %v739
        %741 = vmatmul.f32.gmra.mxu0 %v678
        %v742 = vpop.f32.mrf.mxu0
        %v743 = vadd.f32 %v641, %v742
        %744 = vmatmul.f32.gmra.mxu0 %v681
        %v745 = vpop.f32.mrf.mxu0
        %v746 = vadd.f32 %v641, %v745
        %747 = vmatmul.f32.gmra.mxu0 %v684
        %v748 = vpop.f32.mrf.mxu0
        %v749 = vadd.f32 %v641, %v748
        %750 = vmatmul.f32.gmra.mxu0 %v687
        %v751 = vpop.f32.mrf.mxu0
        %v752 = vadd.f32 %v641, %v751
        %753 = vmatmul.f32.gmra.mxu0 %v690
        %v754 = vpop.f32.mrf.mxu0
        %v755 = vadd.f32 %v641, %v754
        %756 = vdwg.mxu0
        %vm757 = vcmask 130048
        %v759 = vsel %vm757, %v493, 0
        %v762 = vsel %vm757, %v494, 0
        %764 = vmatpush.msra.mxu0 0.0
        %765 = vmatpush.msra.mxu0 0.0
        %766 = vmatpush.msra.mxu0 0.0
        %767 = vmatpush.msra.mxu0 0.0
        %768 = vmatpush.msra.mxu0 0.0
        %769 = vmatpush.msra.mxu0 0.0
        %770 = vmatpush.msra.mxu0 0.0
        %771 = vmatpush.msra.mxu0 0.0
        %772 = vmatpush.msra.mxu0 0.0
        %773 = vmatpush.msra.mxu0 0.0
        %774 = vmatpush.msra.mxu0 0.0
        %775 = vmatpush.msra.mxu0 0.0
        %776 = vmatpush.msra.mxu0 0.0
        %777 = vmatpush.msra.mxu0 0.0
        %778 = vmatpush.msra.mxu0 %v713
        %779 = vmatpush.msra.mxu0 %v710
        %780 = vmatmul.f32.gmra.mxu0 %v759
        %v781 = vpop.f32.mrf.mxu0
        %v782 = vadd.f32 0.0, %v781
        %783 = vmatmul.f32.gmra.mxu0 %v762
        %v784 = vpop.f32.mrf.mxu0
        %v785 = vadd.f32 0.0, %v784
        %786 = vdwg.mxu0
        %v788 = vsel %vm757, %v495, 0
        %v791 = vsel %vm757, %v496, 0
        %793 = vmatpush.msra.mxu0 0.0
        %794 = vmatpush.msra.mxu0 0.0
        %795 = vmatpush.msra.mxu0 0.0
        %796 = vmatpush.msra.mxu0 0.0
        %797 = vmatpush.msra.mxu0 0.0
        %798 = vmatpush.msra.mxu0 0.0
        %799 = vmatpush.msra.mxu0 0.0
        %800 = vmatpush.msra.mxu0 0.0
        %801 = vmatpush.msra.mxu0 0.0
        %802 = vmatpush.msra.mxu0 0.0
        %803 = vmatpush.msra.mxu0 0.0
        %804 = vmatpush.msra.mxu0 0.0
        %805 = vmatpush.msra.mxu0 0.0
        %806 = vmatpush.msra.mxu0 0.0
        %807 = vmatpush.msra.mxu0 %v719
        %808 = vmatpush.msra.mxu0 %v716
        %809 = vmatmul.f32.gmra.mxu0 %v788
        %v810 = vpop.f32.mrf.mxu0
        %v811 = vadd.f32 0.0, %v810
        %812 = vmatmul.f32.gmra.mxu0 %v791
        %v813 = vpop.f32.mrf.mxu0
        %v814 = vadd.f32 0.0, %v813
        %815 = vdwg.mxu0
        %v817 = vsel %vm757, %v497, 0
        %v820 = vsel %vm757, %v498, 0
        %822 = vmatpush.msra.mxu0 0.0
        %823 = vmatpush.msra.mxu0 0.0
        %824 = vmatpush.msra.mxu0 0.0
        %825 = vmatpush.msra.mxu0 0.0
        %826 = vmatpush.msra.mxu0 0.0
        %827 = vmatpush.msra.mxu0 0.0
        %828 = vmatpush.msra.mxu0 0.0
        %829 = vmatpush.msra.mxu0 0.0
        %830 = vmatpush.msra.mxu0 0.0
        %831 = vmatpush.msra.mxu0 0.0
        %832 = vmatpush.msra.mxu0 0.0
        %833 = vmatpush.msra.mxu0 0.0
        %834 = vmatpush.msra.mxu0 0.0
        %835 = vmatpush.msra.mxu0 0.0
        %836 = vmatpush.msra.mxu0 %v725
        %837 = vmatpush.msra.mxu0 %v722
        %838 = vmatmul.f32.gmra.mxu0 %v817
        %v839 = vpop.f32.mrf.mxu0
        %v840 = vadd.f32 0.0, %v839
        %841 = vmatmul.f32.gmra.mxu0 %v820
        %v842 = vpop.f32.mrf.mxu0
        %v843 = vadd.f32 0.0, %v842
        %844 = vdwg.mxu0
        %v846 = vsel %vm757, %v499, 0
        %v849 = vsel %vm757, %v500, 0
        %851 = vmatpush.msra.mxu0 0.0
        %852 = vmatpush.msra.mxu0 0.0
        %853 = vmatpush.msra.mxu0 0.0
        %854 = vmatpush.msra.mxu0 0.0
        %855 = vmatpush.msra.mxu0 0.0
        %856 = vmatpush.msra.mxu0 0.0
        %857 = vmatpush.msra.mxu0 0.0
        %858 = vmatpush.msra.mxu0 0.0
        %859 = vmatpush.msra.mxu0 0.0
        %860 = vmatpush.msra.mxu0 0.0
        %861 = vmatpush.msra.mxu0 0.0
        %862 = vmatpush.msra.mxu0 0.0
        %863 = vmatpush.msra.mxu0 0.0
        %864 = vmatpush.msra.mxu0 0.0
        %865 = vmatpush.msra.mxu0 %v731
        %866 = vmatpush.msra.mxu0 %v728
        %867 = vmatmul.f32.gmra.mxu0 %v846
        %v868 = vpop.f32.mrf.mxu0
        %v869 = vadd.f32 0.0, %v868
        %870 = vmatmul.f32.gmra.mxu0 %v849
        %v871 = vpop.f32.mrf.mxu0
        %v872 = vadd.f32 0.0, %v871
        %873 = vdwg.mxu0
        %v875 = vsel %vm757, %v501, 0
        %v878 = vsel %vm757, %v502, 0
        %880 = vmatpush.msra.mxu0 0.0
        %881 = vmatpush.msra.mxu0 0.0
        %882 = vmatpush.msra.mxu0 0.0
        %883 = vmatpush.msra.mxu0 0.0
        %884 = vmatpush.msra.mxu0 0.0
        %885 = vmatpush.msra.mxu0 0.0
        %886 = vmatpush.msra.mxu0 0.0
        %887 = vmatpush.msra.mxu0 0.0
        %888 = vmatpush.msra.mxu0 0.0
        %889 = vmatpush.msra.mxu0 0.0
        %890 = vmatpush.msra.mxu0 0.0
        %891 = vmatpush.msra.mxu0 0.0
        %892 = vmatpush.msra.mxu0 0.0
        %893 = vmatpush.msra.mxu0 0.0
        %894 = vmatpush.msra.mxu0 %v737
        %895 = vmatpush.msra.mxu0 %v734
        %896 = vmatmul.f32.gmra.mxu0 %v875
        %v897 = vpop.f32.mrf.mxu0
        %v898 = vadd.f32 0.0, %v897
        %899 = vmatmul.f32.gmra.mxu0 %v878
        %v900 = vpop.f32.mrf.mxu0
        %v901 = vadd.f32 0.0, %v900
        %902 = vdwg.mxu0
        %v904 = vsel %vm757, %v503, 0
        %v907 = vsel %vm757, %v504, 0
        %909 = vmatpush.msra.mxu0 0.0
        %910 = vmatpush.msra.mxu0 0.0
        %911 = vmatpush.msra.mxu0 0.0
        %912 = vmatpush.msra.mxu0 0.0
        %913 = vmatpush.msra.mxu0 0.0
        %914 = vmatpush.msra.mxu0 0.0
        %915 = vmatpush.msra.mxu0 0.0
        %916 = vmatpush.msra.mxu0 0.0
        %917 = vmatpush.msra.mxu0 0.0
        %918 = vmatpush.msra.mxu0 0.0
        %919 = vmatpush.msra.mxu0 0.0
        %920 = vmatpush.msra.mxu0 0.0
        %921 = vmatpush.msra.mxu0 0.0
        %922 = vmatpush.msra.mxu0 0.0
        %923 = vmatpush.msra.mxu0 %v743
        %924 = vmatpush.msra.mxu0 %v740
        %925 = vmatmul.f32.gmra.mxu0 %v904
        %v926 = vpop.f32.mrf.mxu0
        %v927 = vadd.f32 0.0, %v926
        %928 = vmatmul.f32.gmra.mxu0 %v907
        %v929 = vpop.f32.mrf.mxu0
        %v930 = vadd.f32 0.0, %v929
        %931 = vdwg.mxu0
        %v933 = vsel %vm757, %v505, 0
        %v936 = vsel %vm757, %v506, 0
        %938 = vmatpush.msra.mxu0 0.0
        %939 = vmatpush.msra.mxu0 0.0
        %940 = vmatpush.msra.mxu0 0.0
        %941 = vmatpush.msra.mxu0 0.0
        %942 = vmatpush.msra.mxu0 0.0
        %943 = vmatpush.msra.mxu0 0.0
        %944 = vmatpush.msra.mxu0 0.0
        %945 = vmatpush.msra.mxu0 0.0
        %946 = vmatpush.msra.mxu0 0.0
        %947 = vmatpush.msra.mxu0 0.0
        %948 = vmatpush.msra.mxu0 0.0
        %949 = vmatpush.msra.mxu0 0.0
        %950 = vmatpush.msra.mxu0 0.0
        %951 = vmatpush.msra.mxu0 0.0
        %952 = vmatpush.msra.mxu0 %v749
        %953 = vmatpush.msra.mxu0 %v746
        %954 = vmatmul.f32.gmra.mxu0 %v933
        %v955 = vpop.f32.mrf.mxu0
        %v956 = vadd.f32 0.0, %v955
        %957 = vmatmul.f32.gmra.mxu0 %v936
        %v958 = vpop.f32.mrf.mxu0
        %v959 = vadd.f32 0.0, %v958
        %960 = vdwg.mxu0
        %v962 = vsel %vm757, %v507, 0
        %v965 = vsel %vm757, %v508, 0
        %967 = vmatpush.msra.mxu0 0.0
        %968 = vmatpush.msra.mxu0 0.0
        %969 = vmatpush.msra.mxu0 0.0
        %970 = vmatpush.msra.mxu0 0.0
        %971 = vmatpush.msra.mxu0 0.0
        %972 = vmatpush.msra.mxu0 0.0
        %973 = vmatpush.msra.mxu0 0.0
        %974 = vmatpush.msra.mxu0 0.0
        %975 = vmatpush.msra.mxu0 0.0
        %976 = vmatpush.msra.mxu0 0.0
        %977 = vmatpush.msra.mxu0 0.0
        %978 = vmatpush.msra.mxu0 0.0
        %979 = vmatpush.msra.mxu0 0.0
        %980 = vmatpush.msra.mxu0 0.0
        %981 = vmatpush.msra.mxu0 %v755
        %982 = vmatpush.msra.mxu0 %v752
        %983 = vmatmul.f32.gmra.mxu0 %v962
        %v984 = vpop.f32.mrf.mxu0
        %v985 = vadd.f32 0.0, %v984
        %986 = vmatmul.f32.gmra.mxu0 %v965
        %v987 = vpop.f32.mrf.mxu0
        %v988 = vadd.f32 0.0, %v987
        %989 = vdwg.mxu0
        %v990 = vmax.f32 %v782, 0.0
        %v991 = vmax.f32 %v785, 0.0
        %v992 = vmax.f32 %v811, 0.0
        %v993 = vmax.f32 %v814, 0.0
        %v994 = vmax.f32 %v840, 0.0
        %v995 = vmax.f32 %v843, 0.0
        %v996 = vmax.f32 %v869, 0.0
        %v997 = vmax.f32 %v872, 0.0
        %v998 = vmax.f32 %v898, 0.0
        %v999 = vmax.f32 %v901, 0.0
        %v1000 = vmax.f32 %v927, 0.0
        %v1001 = vmax.f32 %v930, 0.0
        %v1002 = vmax.f32 %v956, 0.0
        %v1003 = vmax.f32 %v959, 0.0
        %v1004 = vmax.f32 %v985, 0.0
        %v1005 = vmax.f32 %v988, 0.0
        %s1006 = scalar_lea.vmem %s4, 32
        %v1007 = vld [vmem:[%s1006] sm:$0xff]
        %v1008 = vld [vmem:[%s1006 + $0x8] sm:$0xff]
        %v1009 = vld [vmem:[%s1006 + $0x10] sm:$0xff]
        %v1010 = vld [vmem:[%s1006 + $0x18] sm:$0xff]
        %s1011 = scalar_lea.vmem %s5, 1
        %v1012 = vld [vmem:[%s1011] sm:$0x1]
        %v1014 = vperm.slane %v1012, 0
        %v1017 = vsel %vm643, %v990, 0
        %v1020 = vsel %vm643, %v991, 0
        %v1023 = vsel %vm643, %v992, 0
        %v1026 = vsel %vm643, %v993, 0
        %v1029 = vsel %vm643, %v994, 0
        %v1032 = vsel %vm643, %v995, 0
        %v1035 = vsel %vm643, %v996, 0
        %v1038 = vsel %vm643, %v997, 0
        %v1041 = vsel %vm643, %v998, 0
        %v1044 = vsel %vm643, %v999, 0
        %v1047 = vsel %vm643, %v1000, 0
        %v1050 = vsel %vm643, %v1001, 0
        %v1053 = vsel %vm643, %v1002, 0
        %v1056 = vsel %vm643, %v1003, 0
        %v1059 = vsel %vm643, %v1004, 0
        %v1062 = vsel %vm643, %v1005, 0
        %1064 = vmatpush.msra.mxu0 0.0
        %1065 = vmatpush.msra.mxu0 0.0
        %1066 = vmatpush.msra.mxu0 0.0
        %1067 = vmatpush.msra.mxu0 0.0
        %1068 = vmatpush.msra.mxu0 0.0
        %1069 = vmatpush.msra.mxu0 0.0
        %1070 = vmatpush.msra.mxu0 0.0
        %1071 = vmatpush.msra.mxu0 0.0
        %1072 = vmatpush.msra.mxu0 0.0
        %1073 = vmatpush.msra.mxu0 0.0
        %1074 = vmatpush.msra.mxu0 0.0
        %1075 = vmatpush.msra.mxu0 0.0
        %1076 = vmatpush.msra.mxu0 %v1010
        %1077 = vmatpush.msra.mxu0 %v1009
        %1078 = vmatpush.msra.mxu0 %v1008
        %1079 = vmatpush.msra.mxu0 %v1007
        %1080 = vmatmul.f32.gmra.mxu0 %v1017
        %v1081 = vpop.f32.mrf.mxu0
        %v1082 = vadd.f32 %v1014, %v1081
        %1083 = vmatmul.f32.gmra.mxu0 %v1020
        %v1084 = vpop.f32.mrf.mxu0
        %v1085 = vadd.f32 %v1014, %v1084
        %1086 = vmatmul.f32.gmra.mxu0 %v1023
        %v1087 = vpop.f32.mrf.mxu0
        %v1088 = vadd.f32 %v1014, %v1087
        %1089 = vmatmul.f32.gmra.mxu0 %v1026
        %v1090 = vpop.f32.mrf.mxu0
        %v1091 = vadd.f32 %v1014, %v1090
        %1092 = vmatmul.f32.gmra.mxu0 %v1029
        %v1093 = vpop.f32.mrf.mxu0
        %v1094 = vadd.f32 %v1014, %v1093
        %1095 = vmatmul.f32.gmra.mxu0 %v1032
        %v1096 = vpop.f32.mrf.mxu0
        %v1097 = vadd.f32 %v1014, %v1096
        %1098 = vmatmul.f32.gmra.mxu0 %v1035
        %v1099 = vpop.f32.mrf.mxu0
        %v1100 = vadd.f32 %v1014, %v1099
        %1101 = vmatmul.f32.gmra.mxu0 %v1038
        %v1102 = vpop.f32.mrf.mxu0
        %v1103 = vadd.f32 %v1014, %v1102
        %1104 = vmatmul.f32.gmra.mxu0 %v1041
        %v1105 = vpop.f32.mrf.mxu0
        %v1106 = vadd.f32 %v1014, %v1105
        %1107 = vmatmul.f32.gmra.mxu0 %v1044
        %v1108 = vpop.f32.mrf.mxu0
        %v1109 = vadd.f32 %v1014, %v1108
        %1110 = vmatmul.f32.gmra.mxu0 %v1047
        %v1111 = vpop.f32.mrf.mxu0
        %v1112 = vadd.f32 %v1014, %v1111
        %1113 = vmatmul.f32.gmra.mxu0 %v1050
        %v1114 = vpop.f32.mrf.mxu0
        %v1115 = vadd.f32 %v1014, %v1114
        %1116 = vmatmul.f32.gmra.mxu0 %v1053
        %v1117 = vpop.f32.mrf.mxu0
        %v1118 = vadd.f32 %v1014, %v1117
        %1119 = vmatmul.f32.gmra.mxu0 %v1056
        %v1120 = vpop.f32.mrf.mxu0
        %v1121 = vadd.f32 %v1014, %v1120
        %1122 = vmatmul.f32.gmra.mxu0 %v1059
        %v1123 = vpop.f32.mrf.mxu0
        %v1124 = vadd.f32 %v1014, %v1123
        %1125 = vmatmul.f32.gmra.mxu0 %v1062
        %v1126 = vpop.f32.mrf.mxu0
        %v1127 = vadd.f32 %v1014, %v1126
        %1128 = vdwg.mxu0
        %1129 = vmatpush.msra.mxu0 0.0
        %1130 = vmatpush.msra.mxu0 0.0
        %1131 = vmatpush.msra.mxu0 0.0
        %1132 = vmatpush.msra.mxu0 0.0
        %1133 = vmatpush.msra.mxu0 0.0
        %1134 = vmatpush.msra.mxu0 0.0
        %1135 = vmatpush.msra.mxu0 0.0
        %1136 = vmatpush.msra.mxu0 0.0
        %1137 = vmatpush.msra.mxu0 0.0
        %1138 = vmatpush.msra.mxu0 0.0
        %1139 = vmatpush.msra.mxu0 0.0
        %1140 = vmatpush.msra.mxu0 0.0
        %1141 = vmatpush.msra.mxu0 0.0
        %1142 = vmatpush.msra.mxu0 0.0
        %1143 = vmatpush.msra.mxu0 %v1085
        %1144 = vmatpush.msra.mxu0 %v1082
        %1145 = vmatmul.f32.gmra.mxu0 %v759
        %v1146 = vpop.f32.mrf.mxu0
        %v1147 = vadd.f32 0.0, %v1146
        %1148 = vmatmul.f32.gmra.mxu0 %v762
        %v1149 = vpop.f32.mrf.mxu0
        %v1150 = vadd.f32 0.0, %v1149
        %1151 = vdwg.mxu0
        %1152 = vmatpush.msra.mxu0 0.0
        %1153 = vmatpush.msra.mxu0 0.0
        %1154 = vmatpush.msra.mxu0 0.0
        %1155 = vmatpush.msra.mxu0 0.0
        %1156 = vmatpush.msra.mxu0 0.0
        %1157 = vmatpush.msra.mxu0 0.0
        %1158 = vmatpush.msra.mxu0 0.0
        %1159 = vmatpush.msra.mxu0 0.0
        %1160 = vmatpush.msra.mxu0 0.0
        %1161 = vmatpush.msra.mxu0 0.0
        %1162 = vmatpush.msra.mxu0 0.0
        %1163 = vmatpush.msra.mxu0 0.0
        %1164 = vmatpush.msra.mxu0 0.0
        %1165 = vmatpush.msra.mxu0 0.0
        %1166 = vmatpush.msra.mxu0 %v1091
        %1167 = vmatpush.msra.mxu0 %v1088
        %1168 = vmatmul.f32.gmra.mxu0 %v788
        %v1169 = vpop.f32.mrf.mxu0
        %v1170 = vadd.f32 0.0, %v1169
        %1171 = vmatmul.f32.gmra.mxu0 %v791
        %v1172 = vpop.f32.mrf.mxu0
        %v1173 = vadd.f32 0.0, %v1172
        %1174 = vdwg.mxu0
        %1175 = vmatpush.msra.mxu0 0.0
        %1176 = vmatpush.msra.mxu0 0.0
        %1177 = vmatpush.msra.mxu0 0.0
        %1178 = vmatpush.msra.mxu0 0.0
        %1179 = vmatpush.msra.mxu0 0.0
        %1180 = vmatpush.msra.mxu0 0.0
        %1181 = vmatpush.msra.mxu0 0.0
        %1182 = vmatpush.msra.mxu0 0.0
        %1183 = vmatpush.msra.mxu0 0.0
        %1184 = vmatpush.msra.mxu0 0.0
        %1185 = vmatpush.msra.mxu0 0.0
        %1186 = vmatpush.msra.mxu0 0.0
        %1187 = vmatpush.msra.mxu0 0.0
        %1188 = vmatpush.msra.mxu0 0.0
        %1189 = vmatpush.msra.mxu0 %v1097
        %1190 = vmatpush.msra.mxu0 %v1094
        %1191 = vmatmul.f32.gmra.mxu0 %v817
        %v1192 = vpop.f32.mrf.mxu0
        %v1193 = vadd.f32 0.0, %v1192
        %1194 = vmatmul.f32.gmra.mxu0 %v820
        %v1195 = vpop.f32.mrf.mxu0
        %v1196 = vadd.f32 0.0, %v1195
        %1197 = vdwg.mxu0
        %1198 = vmatpush.msra.mxu0 0.0
        %1199 = vmatpush.msra.mxu0 0.0
        %1200 = vmatpush.msra.mxu0 0.0
        %1201 = vmatpush.msra.mxu0 0.0
        %1202 = vmatpush.msra.mxu0 0.0
        %1203 = vmatpush.msra.mxu0 0.0
        %1204 = vmatpush.msra.mxu0 0.0
        %1205 = vmatpush.msra.mxu0 0.0
        %1206 = vmatpush.msra.mxu0 0.0
        %1207 = vmatpush.msra.mxu0 0.0
        %1208 = vmatpush.msra.mxu0 0.0
        %1209 = vmatpush.msra.mxu0 0.0
        %1210 = vmatpush.msra.mxu0 0.0
        %1211 = vmatpush.msra.mxu0 0.0
        %1212 = vmatpush.msra.mxu0 %v1103
        %1213 = vmatpush.msra.mxu0 %v1100
        %1214 = vmatmul.f32.gmra.mxu0 %v846
        %v1215 = vpop.f32.mrf.mxu0
        %v1216 = vadd.f32 0.0, %v1215
        %1217 = vmatmul.f32.gmra.mxu0 %v849
        %v1218 = vpop.f32.mrf.mxu0
        %v1219 = vadd.f32 0.0, %v1218
        %1220 = vdwg.mxu0
        %1221 = vmatpush.msra.mxu0 0.0
        %1222 = vmatpush.msra.mxu0 0.0
        %1223 = vmatpush.msra.mxu0 0.0
        %1224 = vmatpush.msra.mxu0 0.0
        %1225 = vmatpush.msra.mxu0 0.0
        %1226 = vmatpush.msra.mxu0 0.0
        %1227 = vmatpush.msra.mxu0 0.0
        %1228 = vmatpush.msra.mxu0 0.0
        %1229 = vmatpush.msra.mxu0 0.0
        %1230 = vmatpush.msra.mxu0 0.0
        %1231 = vmatpush.msra.mxu0 0.0
        %1232 = vmatpush.msra.mxu0 0.0
        %1233 = vmatpush.msra.mxu0 0.0
        %1234 = vmatpush.msra.mxu0 0.0
        %1235 = vmatpush.msra.mxu0 %v1109
        %1236 = vmatpush.msra.mxu0 %v1106
        %1237 = vmatmul.f32.gmra.mxu0 %v875
        %v1238 = vpop.f32.mrf.mxu0
        %v1239 = vadd.f32 0.0, %v1238
        %1240 = vmatmul.f32.gmra.mxu0 %v878
        %v1241 = vpop.f32.mrf.mxu0
        %v1242 = vadd.f32 0.0, %v1241
        %1243 = vdwg.mxu0
        %1244 = vmatpush.msra.mxu0 0.0
        %1245 = vmatpush.msra.mxu0 0.0
        %1246 = vmatpush.msra.mxu0 0.0
        %1247 = vmatpush.msra.mxu0 0.0
        %1248 = vmatpush.msra.mxu0 0.0
        %1249 = vmatpush.msra.mxu0 0.0
        %1250 = vmatpush.msra.mxu0 0.0
        %1251 = vmatpush.msra.mxu0 0.0
        %1252 = vmatpush.msra.mxu0 0.0
        %1253 = vmatpush.msra.mxu0 0.0
        %1254 = vmatpush.msra.mxu0 0.0
        %1255 = vmatpush.msra.mxu0 0.0
        %1256 = vmatpush.msra.mxu0 0.0
        %1257 = vmatpush.msra.mxu0 0.0
        %1258 = vmatpush.msra.mxu0 %v1115
        %1259 = vmatpush.msra.mxu0 %v1112
        %1260 = vmatmul.f32.gmra.mxu0 %v904
        %v1261 = vpop.f32.mrf.mxu0
        %v1262 = vadd.f32 0.0, %v1261
        %1263 = vmatmul.f32.gmra.mxu0 %v907
        %v1264 = vpop.f32.mrf.mxu0
        %v1265 = vadd.f32 0.0, %v1264
        %1266 = vdwg.mxu0
        %1267 = vmatpush.msra.mxu0 0.0
        %1268 = vmatpush.msra.mxu0 0.0
        %1269 = vmatpush.msra.mxu0 0.0
        %1270 = vmatpush.msra.mxu0 0.0
        %1271 = vmatpush.msra.mxu0 0.0
        %1272 = vmatpush.msra.mxu0 0.0
        %1273 = vmatpush.msra.mxu0 0.0
        %1274 = vmatpush.msra.mxu0 0.0
        %1275 = vmatpush.msra.mxu0 0.0
        %1276 = vmatpush.msra.mxu0 0.0
        %1277 = vmatpush.msra.mxu0 0.0
        %1278 = vmatpush.msra.mxu0 0.0
        %1279 = vmatpush.msra.mxu0 0.0
        %1280 = vmatpush.msra.mxu0 0.0
        %1281 = vmatpush.msra.mxu0 %v1121
        %1282 = vmatpush.msra.mxu0 %v1118
        %1283 = vmatmul.f32.gmra.mxu0 %v933
        %v1284 = vpop.f32.mrf.mxu0
        %v1285 = vadd.f32 0.0, %v1284
        %1286 = vmatmul.f32.gmra.mxu0 %v936
        %v1287 = vpop.f32.mrf.mxu0
        %v1288 = vadd.f32 0.0, %v1287
        %1289 = vdwg.mxu0
        %1290 = vmatpush.msra.mxu0 0.0
        %1291 = vmatpush.msra.mxu0 0.0
        %1292 = vmatpush.msra.mxu0 0.0
        %1293 = vmatpush.msra.mxu0 0.0
        %1294 = vmatpush.msra.mxu0 0.0
        %1295 = vmatpush.msra.mxu0 0.0
        %1296 = vmatpush.msra.mxu0 0.0
        %1297 = vmatpush.msra.mxu0 0.0
        %1298 = vmatpush.msra.mxu0 0.0
        %1299 = vmatpush.msra.mxu0 0.0
        %1300 = vmatpush.msra.mxu0 0.0
        %1301 = vmatpush.msra.mxu0 0.0
        %1302 = vmatpush.msra.mxu0 0.0
        %1303 = vmatpush.msra.mxu0 0.0
        %1304 = vmatpush.msra.mxu0 %v1127
        %1305 = vmatpush.msra.mxu0 %v1124
        %1306 = vmatmul.f32.gmra.mxu0 %v962
        %v1307 = vpop.f32.mrf.mxu0
        %v1308 = vadd.f32 0.0, %v1307
        %1309 = vmatmul.f32.gmra.mxu0 %v965
        %v1310 = vpop.f32.mrf.mxu0
        %v1311 = vadd.f32 0.0, %v1310
        %1312 = vdwg.mxu0
        %v1313 = vmax.f32 %v1147, 0.0
        %v1314 = vmax.f32 %v1150, 0.0
        %v1315 = vmax.f32 %v1170, 0.0
        %v1316 = vmax.f32 %v1173, 0.0
        %v1317 = vmax.f32 %v1193, 0.0
        %v1318 = vmax.f32 %v1196, 0.0
        %v1319 = vmax.f32 %v1216, 0.0
        %v1320 = vmax.f32 %v1219, 0.0
        %v1321 = vmax.f32 %v1239, 0.0
        %v1322 = vmax.f32 %v1242, 0.0
        %v1323 = vmax.f32 %v1262, 0.0
        %v1324 = vmax.f32 %v1265, 0.0
        %v1325 = vmax.f32 %v1285, 0.0
        %v1326 = vmax.f32 %v1288, 0.0
        %v1327 = vmax.f32 %v1308, 0.0
        %v1328 = vmax.f32 %v1311, 0.0
        %s1329 = scalar_lea.vmem %s4, 64
        %v1330 = vld [vmem:[%s1329] sm:$0xff]
        %v1331 = vld [vmem:[%s1329 + $0x8] sm:$0xff]
        %v1332 = vld [vmem:[%s1329 + $0x10] sm:$0xff]
        %v1333 = vld [vmem:[%s1329 + $0x18] sm:$0xff]
        %s1334 = scalar_lea.vmem %s5, 2
        %v1335 = vld [vmem:[%s1334] sm:$0x1]
        %v1337 = vperm.slane %v1335, 0
        %v1340 = vsel %vm643, %v1313, 0
        %v1343 = vsel %vm643, %v1314, 0
        %v1346 = vsel %vm643, %v1315, 0
        %v1349 = vsel %vm643, %v1316, 0
        %v1352 = vsel %vm643, %v1317, 0
        %v1355 = vsel %vm643, %v1318, 0
        %v1358 = vsel %vm643, %v1319, 0
        %v1361 = vsel %vm643, %v1320, 0
        %v1364 = vsel %vm643, %v1321, 0
        %v1367 = vsel %vm643, %v1322, 0
        %v1370 = vsel %vm643, %v1323, 0
        %v1373 = vsel %vm643, %v1324, 0
        %v1376 = vsel %vm643, %v1325, 0
        %v1379 = vsel %vm643, %v1326, 0
        %v1382 = vsel %vm643, %v1327, 0
        %v1385 = vsel %vm643, %v1328, 0
        %1387 = vmatpush.msra.mxu0 0.0
        %1388 = vmatpush.msra.mxu0 0.0
        %1389 = vmatpush.msra.mxu0 0.0
        %1390 = vmatpush.msra.mxu0 0.0
        %1391 = vmatpush.msra.mxu0 0.0
        %1392 = vmatpush.msra.mxu0 0.0
        %1393 = vmatpush.msra.mxu0 0.0
        %1394 = vmatpush.msra.mxu0 0.0
        %1395 = vmatpush.msra.mxu0 0.0
        %1396 = vmatpush.msra.mxu0 0.0
        %1397 = vmatpush.msra.mxu0 0.0
        %1398 = vmatpush.msra.mxu0 0.0
        %1399 = vmatpush.msra.mxu0 %v1333
        %1400 = vmatpush.msra.mxu0 %v1332
        %1401 = vmatpush.msra.mxu0 %v1331
        %1402 = vmatpush.msra.mxu0 %v1330
        %1403 = vmatmul.f32.gmra.mxu0 %v1340
        %v1404 = vpop.f32.mrf.mxu0
        %v1405 = vadd.f32 %v1337, %v1404
        %1406 = vmatmul.f32.gmra.mxu0 %v1343
        %v1407 = vpop.f32.mrf.mxu0
        %v1408 = vadd.f32 %v1337, %v1407
        %1409 = vmatmul.f32.gmra.mxu0 %v1346
        %v1410 = vpop.f32.mrf.mxu0
        %v1411 = vadd.f32 %v1337, %v1410
        %1412 = vmatmul.f32.gmra.mxu0 %v1349
        %v1413 = vpop.f32.mrf.mxu0
        %v1414 = vadd.f32 %v1337, %v1413
        %1415 = vmatmul.f32.gmra.mxu0 %v1352
        %v1416 = vpop.f32.mrf.mxu0
        %v1417 = vadd.f32 %v1337, %v1416
        %1418 = vmatmul.f32.gmra.mxu0 %v1355
        %v1419 = vpop.f32.mrf.mxu0
        %v1420 = vadd.f32 %v1337, %v1419
        %1421 = vmatmul.f32.gmra.mxu0 %v1358
        %v1422 = vpop.f32.mrf.mxu0
        %v1423 = vadd.f32 %v1337, %v1422
        %1424 = vmatmul.f32.gmra.mxu0 %v1361
        %v1425 = vpop.f32.mrf.mxu0
        %v1426 = vadd.f32 %v1337, %v1425
        %1427 = vmatmul.f32.gmra.mxu0 %v1364
        %v1428 = vpop.f32.mrf.mxu0
        %v1429 = vadd.f32 %v1337, %v1428
        %1430 = vmatmul.f32.gmra.mxu0 %v1367
        %v1431 = vpop.f32.mrf.mxu0
        %v1432 = vadd.f32 %v1337, %v1431
        %1433 = vmatmul.f32.gmra.mxu0 %v1370
        %v1434 = vpop.f32.mrf.mxu0
        %v1435 = vadd.f32 %v1337, %v1434
        %1436 = vmatmul.f32.gmra.mxu0 %v1373
        %v1437 = vpop.f32.mrf.mxu0
        %v1438 = vadd.f32 %v1337, %v1437
        %1439 = vmatmul.f32.gmra.mxu0 %v1376
        %v1440 = vpop.f32.mrf.mxu0
        %v1441 = vadd.f32 %v1337, %v1440
        %1442 = vmatmul.f32.gmra.mxu0 %v1379
        %v1443 = vpop.f32.mrf.mxu0
        %v1444 = vadd.f32 %v1337, %v1443
        %1445 = vmatmul.f32.gmra.mxu0 %v1382
        %v1446 = vpop.f32.mrf.mxu0
        %v1447 = vadd.f32 %v1337, %v1446
        %1448 = vmatmul.f32.gmra.mxu0 %v1385
        %v1449 = vpop.f32.mrf.mxu0
        %v1450 = vadd.f32 %v1337, %v1449
        %1451 = vdwg.mxu0
        %1452 = vmatpush.msra.mxu0 0.0
        %1453 = vmatpush.msra.mxu0 0.0
        %1454 = vmatpush.msra.mxu0 0.0
        %1455 = vmatpush.msra.mxu0 0.0
        %1456 = vmatpush.msra.mxu0 0.0
        %1457 = vmatpush.msra.mxu0 0.0
        %1458 = vmatpush.msra.mxu0 0.0
        %1459 = vmatpush.msra.mxu0 0.0
        %1460 = vmatpush.msra.mxu0 0.0
        %1461 = vmatpush.msra.mxu0 0.0
        %1462 = vmatpush.msra.mxu0 0.0
        %1463 = vmatpush.msra.mxu0 0.0
        %1464 = vmatpush.msra.mxu0 0.0
        %1465 = vmatpush.msra.mxu0 0.0
        %1466 = vmatpush.msra.mxu0 %v1408
        %1467 = vmatpush.msra.mxu0 %v1405
        %1468 = vmatmul.f32.gmra.mxu0 %v759
        %v1469 = vpop.f32.mrf.mxu0
        %v1470 = vadd.f32 0.0, %v1469
        %1471 = vmatmul.f32.gmra.mxu0 %v762
        %v1472 = vpop.f32.mrf.mxu0
        %v1473 = vadd.f32 0.0, %v1472
        %1474 = vdwg.mxu0
        %1475 = vmatpush.msra.mxu0 0.0
        %1476 = vmatpush.msra.mxu0 0.0
        %1477 = vmatpush.msra.mxu0 0.0
        %1478 = vmatpush.msra.mxu0 0.0
        %1479 = vmatpush.msra.mxu0 0.0
        %1480 = vmatpush.msra.mxu0 0.0
        %1481 = vmatpush.msra.mxu0 0.0
        %1482 = vmatpush.msra.mxu0 0.0
        %1483 = vmatpush.msra.mxu0 0.0
        %1484 = vmatpush.msra.mxu0 0.0
        %1485 = vmatpush.msra.mxu0 0.0
        %1486 = vmatpush.msra.mxu0 0.0
        %1487 = vmatpush.msra.mxu0 0.0
        %1488 = vmatpush.msra.mxu0 0.0
        %1489 = vmatpush.msra.mxu0 %v1414
        %1490 = vmatpush.msra.mxu0 %v1411
        %1491 = vmatmul.f32.gmra.mxu0 %v788
        %v1492 = vpop.f32.mrf.mxu0
        %v1493 = vadd.f32 0.0, %v1492
        %1494 = vmatmul.f32.gmra.mxu0 %v791
        %v1495 = vpop.f32.mrf.mxu0
        %v1496 = vadd.f32 0.0, %v1495
        %1497 = vdwg.mxu0
        %1498 = vmatpush.msra.mxu0 0.0
        %1499 = vmatpush.msra.mxu0 0.0
        %1500 = vmatpush.msra.mxu0 0.0
        %1501 = vmatpush.msra.mxu0 0.0
        %1502 = vmatpush.msra.mxu0 0.0
        %1503 = vmatpush.msra.mxu0 0.0
        %1504 = vmatpush.msra.mxu0 0.0
        %1505 = vmatpush.msra.mxu0 0.0
        %1506 = vmatpush.msra.mxu0 0.0
        %1507 = vmatpush.msra.mxu0 0.0
        %1508 = vmatpush.msra.mxu0 0.0
        %1509 = vmatpush.msra.mxu0 0.0
        %1510 = vmatpush.msra.mxu0 0.0
        %1511 = vmatpush.msra.mxu0 0.0
        %1512 = vmatpush.msra.mxu0 %v1420
        %1513 = vmatpush.msra.mxu0 %v1417
        %1514 = vmatmul.f32.gmra.mxu0 %v817
        %v1515 = vpop.f32.mrf.mxu0
        %v1516 = vadd.f32 0.0, %v1515
        %1517 = vmatmul.f32.gmra.mxu0 %v820
        %v1518 = vpop.f32.mrf.mxu0
        %v1519 = vadd.f32 0.0, %v1518
        %1520 = vdwg.mxu0
        %1521 = vmatpush.msra.mxu0 0.0
        %1522 = vmatpush.msra.mxu0 0.0
        %1523 = vmatpush.msra.mxu0 0.0
        %1524 = vmatpush.msra.mxu0 0.0
        %1525 = vmatpush.msra.mxu0 0.0
        %1526 = vmatpush.msra.mxu0 0.0
        %1527 = vmatpush.msra.mxu0 0.0
        %1528 = vmatpush.msra.mxu0 0.0
        %1529 = vmatpush.msra.mxu0 0.0
        %1530 = vmatpush.msra.mxu0 0.0
        %1531 = vmatpush.msra.mxu0 0.0
        %1532 = vmatpush.msra.mxu0 0.0
        %1533 = vmatpush.msra.mxu0 0.0
        %1534 = vmatpush.msra.mxu0 0.0
        %1535 = vmatpush.msra.mxu0 %v1426
        %1536 = vmatpush.msra.mxu0 %v1423
        %1537 = vmatmul.f32.gmra.mxu0 %v846
        %v1538 = vpop.f32.mrf.mxu0
        %v1539 = vadd.f32 0.0, %v1538
        %1540 = vmatmul.f32.gmra.mxu0 %v849
        %v1541 = vpop.f32.mrf.mxu0
        %v1542 = vadd.f32 0.0, %v1541
        %1543 = vdwg.mxu0
        %1544 = vmatpush.msra.mxu0 0.0
        %1545 = vmatpush.msra.mxu0 0.0
        %1546 = vmatpush.msra.mxu0 0.0
        %1547 = vmatpush.msra.mxu0 0.0
        %1548 = vmatpush.msra.mxu0 0.0
        %1549 = vmatpush.msra.mxu0 0.0
        %1550 = vmatpush.msra.mxu0 0.0
        %1551 = vmatpush.msra.mxu0 0.0
        %1552 = vmatpush.msra.mxu0 0.0
        %1553 = vmatpush.msra.mxu0 0.0
        %1554 = vmatpush.msra.mxu0 0.0
        %1555 = vmatpush.msra.mxu0 0.0
        %1556 = vmatpush.msra.mxu0 0.0
        %1557 = vmatpush.msra.mxu0 0.0
        %1558 = vmatpush.msra.mxu0 %v1432
        %1559 = vmatpush.msra.mxu0 %v1429
        %1560 = vmatmul.f32.gmra.mxu0 %v875
        %v1561 = vpop.f32.mrf.mxu0
        %v1562 = vadd.f32 0.0, %v1561
        %1563 = vmatmul.f32.gmra.mxu0 %v878
        %v1564 = vpop.f32.mrf.mxu0
        %v1565 = vadd.f32 0.0, %v1564
        %1566 = vdwg.mxu0
        %1567 = vmatpush.msra.mxu0 0.0
        %1568 = vmatpush.msra.mxu0 0.0
        %1569 = vmatpush.msra.mxu0 0.0
        %1570 = vmatpush.msra.mxu0 0.0
        %1571 = vmatpush.msra.mxu0 0.0
        %1572 = vmatpush.msra.mxu0 0.0
        %1573 = vmatpush.msra.mxu0 0.0
        %1574 = vmatpush.msra.mxu0 0.0
        %1575 = vmatpush.msra.mxu0 0.0
        %1576 = vmatpush.msra.mxu0 0.0
        %1577 = vmatpush.msra.mxu0 0.0
        %1578 = vmatpush.msra.mxu0 0.0
        %1579 = vmatpush.msra.mxu0 0.0
        %1580 = vmatpush.msra.mxu0 0.0
        %1581 = vmatpush.msra.mxu0 %v1438
        %1582 = vmatpush.msra.mxu0 %v1435
        %1583 = vmatmul.f32.gmra.mxu0 %v904
        %v1584 = vpop.f32.mrf.mxu0
        %v1585 = vadd.f32 0.0, %v1584
        %1586 = vmatmul.f32.gmra.mxu0 %v907
        %v1587 = vpop.f32.mrf.mxu0
        %v1588 = vadd.f32 0.0, %v1587
        %1589 = vdwg.mxu0
        %1590 = vmatpush.msra.mxu0 0.0
        %1591 = vmatpush.msra.mxu0 0.0
        %1592 = vmatpush.msra.mxu0 0.0
        %1593 = vmatpush.msra.mxu0 0.0
        %1594 = vmatpush.msra.mxu0 0.0
        %1595 = vmatpush.msra.mxu0 0.0
        %1596 = vmatpush.msra.mxu0 0.0
        %1597 = vmatpush.msra.mxu0 0.0
        %1598 = vmatpush.msra.mxu0 0.0
        %1599 = vmatpush.msra.mxu0 0.0
        %1600 = vmatpush.msra.mxu0 0.0
        %1601 = vmatpush.msra.mxu0 0.0
        %1602 = vmatpush.msra.mxu0 0.0
        %1603 = vmatpush.msra.mxu0 0.0
        %1604 = vmatpush.msra.mxu0 %v1444
        %1605 = vmatpush.msra.mxu0 %v1441
        %1606 = vmatmul.f32.gmra.mxu0 %v933
        %v1607 = vpop.f32.mrf.mxu0
        %v1608 = vadd.f32 0.0, %v1607
        %1609 = vmatmul.f32.gmra.mxu0 %v936
        %v1610 = vpop.f32.mrf.mxu0
        %v1611 = vadd.f32 0.0, %v1610
        %1612 = vdwg.mxu0
        %1613 = vmatpush.msra.mxu0 0.0
        %1614 = vmatpush.msra.mxu0 0.0
        %1615 = vmatpush.msra.mxu0 0.0
        %1616 = vmatpush.msra.mxu0 0.0
        %1617 = vmatpush.msra.mxu0 0.0
        %1618 = vmatpush.msra.mxu0 0.0
        %1619 = vmatpush.msra.mxu0 0.0
        %1620 = vmatpush.msra.mxu0 0.0
        %1621 = vmatpush.msra.mxu0 0.0
        %1622 = vmatpush.msra.mxu0 0.0
        %1623 = vmatpush.msra.mxu0 0.0
        %1624 = vmatpush.msra.mxu0 0.0
        %1625 = vmatpush.msra.mxu0 0.0
        %1626 = vmatpush.msra.mxu0 0.0
        %1627 = vmatpush.msra.mxu0 %v1450
        %1628 = vmatpush.msra.mxu0 %v1447
        %1629 = vmatmul.f32.gmra.mxu0 %v962
        %v1630 = vpop.f32.mrf.mxu0
        %v1631 = vadd.f32 0.0, %v1630
        %1632 = vmatmul.f32.gmra.mxu0 %v965
        %v1633 = vpop.f32.mrf.mxu0
        %v1634 = vadd.f32 0.0, %v1633
        %1635 = vdwg.mxu0
        %v1636 = vmax.f32 %v1470, 0.0
        %v1637 = vmax.f32 %v1473, 0.0
        %v1638 = vmax.f32 %v1493, 0.0
        %v1639 = vmax.f32 %v1496, 0.0
        %v1640 = vmax.f32 %v1516, 0.0
        %v1641 = vmax.f32 %v1519, 0.0
        %v1642 = vmax.f32 %v1539, 0.0
        %v1643 = vmax.f32 %v1542, 0.0
        %v1644 = vmax.f32 %v1562, 0.0
        %v1645 = vmax.f32 %v1565, 0.0
        %v1646 = vmax.f32 %v1585, 0.0
        %v1647 = vmax.f32 %v1588, 0.0
        %v1648 = vmax.f32 %v1608, 0.0
        %v1649 = vmax.f32 %v1611, 0.0
        %v1650 = vmax.f32 %v1631, 0.0
        %v1651 = vmax.f32 %v1634, 0.0
        %v1652 = vld [vmem:[%s6] sm:$0xff]
        %v1653 = vld [vmem:[%s6 + $0x8] sm:$0xff]
        %v1654 = vld [vmem:[%s6 + $0x10] sm:$0xff]
        %v1655 = vld [vmem:[%s6 + $0x18] sm:$0xff]
        %v1656 = vld [vmem:[%s7] sm:$0x1]
        %v1658 = vperm.slane %v1656, 0
        %v1661 = vsel %vm643, %v1636, 0
        %v1664 = vsel %vm643, %v1637, 0
        %v1667 = vsel %vm643, %v1638, 0
        %v1670 = vsel %vm643, %v1639, 0
        %v1673 = vsel %vm643, %v1640, 0
        %v1676 = vsel %vm643, %v1641, 0
        %v1679 = vsel %vm643, %v1642, 0
        %v1682 = vsel %vm643, %v1643, 0
        %v1685 = vsel %vm643, %v1644, 0
        %v1688 = vsel %vm643, %v1645, 0
        %v1691 = vsel %vm643, %v1646, 0
        %v1694 = vsel %vm643, %v1647, 0
        %v1697 = vsel %vm643, %v1648, 0
        %v1700 = vsel %vm643, %v1649, 0
        %v1703 = vsel %vm643, %v1650, 0
        %v1706 = vsel %vm643, %v1651, 0
        %1708 = vmatpush.msra.mxu0 0.0
        %1709 = vmatpush.msra.mxu0 0.0
        %1710 = vmatpush.msra.mxu0 0.0
        %1711 = vmatpush.msra.mxu0 0.0
        %1712 = vmatpush.msra.mxu0 0.0
        %1713 = vmatpush.msra.mxu0 0.0
        %1714 = vmatpush.msra.mxu0 0.0
        %1715 = vmatpush.msra.mxu0 0.0
        %1716 = vmatpush.msra.mxu0 0.0
        %1717 = vmatpush.msra.mxu0 0.0
        %1718 = vmatpush.msra.mxu0 0.0
        %1719 = vmatpush.msra.mxu0 0.0
        %1720 = vmatpush.msra.mxu0 %v1655
        %1721 = vmatpush.msra.mxu0 %v1654
        %1722 = vmatpush.msra.mxu0 %v1653
        %1723 = vmatpush.msra.mxu0 %v1652
        %1724 = vmatmul.f32.gmra.mxu0 %v1661
        %v1725 = vpop.f32.mrf.mxu0
        %v1726 = vadd.f32 %v1658, %v1725
        %1727 = vmatmul.f32.gmra.mxu0 %v1664
        %v1728 = vpop.f32.mrf.mxu0
        %v1729 = vadd.f32 %v1658, %v1728
        %1730 = vmatmul.f32.gmra.mxu0 %v1667
        %v1731 = vpop.f32.mrf.mxu0
        %v1732 = vadd.f32 %v1658, %v1731
        %1733 = vmatmul.f32.gmra.mxu0 %v1670
        %v1734 = vpop.f32.mrf.mxu0
        %v1735 = vadd.f32 %v1658, %v1734
        %1736 = vmatmul.f32.gmra.mxu0 %v1673
        %v1737 = vpop.f32.mrf.mxu0
        %v1738 = vadd.f32 %v1658, %v1737
        %1739 = vmatmul.f32.gmra.mxu0 %v1676
        %v1740 = vpop.f32.mrf.mxu0
        %v1741 = vadd.f32 %v1658, %v1740
        %1742 = vmatmul.f32.gmra.mxu0 %v1679
        %v1743 = vpop.f32.mrf.mxu0
        %v1744 = vadd.f32 %v1658, %v1743
        %1745 = vmatmul.f32.gmra.mxu0 %v1682
        %v1746 = vpop.f32.mrf.mxu0
        %v1747 = vadd.f32 %v1658, %v1746
        %1748 = vmatmul.f32.gmra.mxu0 %v1685
        %v1749 = vpop.f32.mrf.mxu0
        %v1750 = vadd.f32 %v1658, %v1749
        %1751 = vmatmul.f32.gmra.mxu0 %v1688
        %v1752 = vpop.f32.mrf.mxu0
        %v1753 = vadd.f32 %v1658, %v1752
        %1754 = vmatmul.f32.gmra.mxu0 %v1691
        %v1755 = vpop.f32.mrf.mxu0
        %v1756 = vadd.f32 %v1658, %v1755
        %1757 = vmatmul.f32.gmra.mxu0 %v1694
        %v1758 = vpop.f32.mrf.mxu0
        %v1759 = vadd.f32 %v1658, %v1758
        %1760 = vmatmul.f32.gmra.mxu0 %v1697
        %v1761 = vpop.f32.mrf.mxu0
        %v1762 = vadd.f32 %v1658, %v1761
        %1763 = vmatmul.f32.gmra.mxu0 %v1700
        %v1764 = vpop.f32.mrf.mxu0
        %v1765 = vadd.f32 %v1658, %v1764
        %1766 = vmatmul.f32.gmra.mxu0 %v1703
        %v1767 = vpop.f32.mrf.mxu0
        %v1768 = vadd.f32 %v1658, %v1767
        %1769 = vmatmul.f32.gmra.mxu0 %v1706
        %v1770 = vpop.f32.mrf.mxu0
        %v1771 = vadd.f32 %v1658, %v1770
        %1772 = vdwg.mxu0
        %v1773 = vsel %vm643, %v1726, 0.0
        %v1774 = vsel %vm643, %v1729, 0.0
        %v1775 = vadd.f32 %v1773, %v1774
        %v1776 = vrot.slane %v1775, 4
        %v1777 = vadd.f32 %v1775, %v1776
        %v1778 = vrot.slane %v1777, 2
        %v1779 = vadd.f32 %v1777, %v1778
        %v1780 = vrot.slane %v1779, 1
        %v1781 = vadd.f32 %v1779, %v1780
        %v1782 = vsel %vm643, %v1732, 0.0
        %v1783 = vsel %vm643, %v1735, 0.0
        %v1784 = vadd.f32 %v1782, %v1783
        %v1785 = vrot.slane %v1784, 4
        %v1786 = vadd.f32 %v1784, %v1785
        %v1787 = vrot.slane %v1786, 2
        %v1788 = vadd.f32 %v1786, %v1787
        %v1789 = vrot.slane %v1788, 1
        %v1790 = vadd.f32 %v1788, %v1789
        %v1791 = vsel %vm643, %v1738, 0.0
        %v1792 = vsel %vm643, %v1741, 0.0
        %v1793 = vadd.f32 %v1791, %v1792
        %v1794 = vrot.slane %v1793, 4
        %v1795 = vadd.f32 %v1793, %v1794
        %v1796 = vrot.slane %v1795, 2
        %v1797 = vadd.f32 %v1795, %v1796
        %v1798 = vrot.slane %v1797, 1
        %v1799 = vadd.f32 %v1797, %v1798
        %v1800 = vsel %vm643, %v1744, 0.0
        %v1801 = vsel %vm643, %v1747, 0.0
        %v1802 = vadd.f32 %v1800, %v1801
        %v1803 = vrot.slane %v1802, 4
        %v1804 = vadd.f32 %v1802, %v1803
        %v1805 = vrot.slane %v1804, 2
        %v1806 = vadd.f32 %v1804, %v1805
        %v1807 = vrot.slane %v1806, 1
        %v1808 = vadd.f32 %v1806, %v1807
        %v1809 = vsel %vm643, %v1750, 0.0
        %v1810 = vsel %vm643, %v1753, 0.0
        %v1811 = vadd.f32 %v1809, %v1810
        %v1812 = vrot.slane %v1811, 4
        %v1813 = vadd.f32 %v1811, %v1812
        %v1814 = vrot.slane %v1813, 2
        %v1815 = vadd.f32 %v1813, %v1814
        %v1816 = vrot.slane %v1815, 1
        %v1817 = vadd.f32 %v1815, %v1816
        %v1818 = vsel %vm643, %v1756, 0.0
        %v1819 = vsel %vm643, %v1759, 0.0
        %v1820 = vadd.f32 %v1818, %v1819
        %v1821 = vrot.slane %v1820, 4
        %v1822 = vadd.f32 %v1820, %v1821
        %v1823 = vrot.slane %v1822, 2
        %v1824 = vadd.f32 %v1822, %v1823
        %v1825 = vrot.slane %v1824, 1
        %v1826 = vadd.f32 %v1824, %v1825
        %v1827 = vsel %vm643, %v1762, 0.0
        %v1828 = vsel %vm643, %v1765, 0.0
        %v1829 = vadd.f32 %v1827, %v1828
        %v1830 = vrot.slane %v1829, 4
        %v1831 = vadd.f32 %v1829, %v1830
        %v1832 = vrot.slane %v1831, 2
        %v1833 = vadd.f32 %v1831, %v1832
        %v1834 = vrot.slane %v1833, 1
        %v1835 = vadd.f32 %v1833, %v1834
        %v1836 = vsel %vm643, %v1768, 0.0
        %v1837 = vsel %vm643, %v1771, 0.0
        %v1838 = vadd.f32 %v1836, %v1837
        %v1839 = vrot.slane %v1838, 4
        %v1840 = vadd.f32 %v1838, %v1839
        %v1841 = vrot.slane %v1840, 2
        %v1842 = vadd.f32 %v1840, %v1841
        %v1843 = vrot.slane %v1842, 1
        %v1844 = vadd.f32 %v1842, %v1843
        %v1845 = vrcp.pop 16.0
        %v1846 = vmul.f32 16.0, %v1845
        %v1847 = vsub.f32 1.0, %v1846
        %v1848 = vmul.f32 %v1845, %v1847
        %v1849 = vadd.f32 %v1845, %v1848
        %vm1850 = vweird.f32 %v1845
        %v1851 = vsel %vm1850, %v1845, %v1849
        %v1852 = vmul.f32 %v1781, %v1851
        %v1853 = vmul.f32 %v1790, %v1851
        %v1854 = vmul.f32 %v1799, %v1851
        %v1855 = vmul.f32 %v1808, %v1851
        %v1856 = vmul.f32 %v1817, %v1851
        %v1857 = vmul.f32 %v1826, %v1851
        %v1858 = vmul.f32 %v1835, %v1851
        %v1859 = vmul.f32 %v1844, %v1851
        %v1860 = vmax.f32 %v1852, 0.0
        %v1861 = vmax.f32 %v1853, 0.0
        %v1862 = vmax.f32 %v1854, 0.0
        %v1863 = vmax.f32 %v1855, 0.0
        %v1864 = vmax.f32 %v1856, 0.0
        %v1865 = vmax.f32 %v1857, 0.0
        %v1866 = vmax.f32 %v1858, 0.0
        %v1867 = vmax.f32 %v1859, 0.0
        %v1868 = vld [vmem:[%s8] sm:$0xff]
        %v1869 = vld [vmem:[%s8 + $0x8] sm:$0xff]
        %v1870 = vld [vmem:[%s8 + $0x10] sm:$0xff]
        %v1871 = vld [vmem:[%s8 + $0x18] sm:$0xff]
        %v1872 = vld [vmem:[%s9] sm:$0x1]
        %v1874 = vperm.slane %v1872, 0
        %vm1884 = vcmask 1041409
        %v1885 = vsel %vm1884, %v1861, %v1860
        %vm1886 = vcmask 1042434
        %v1887 = vsel %vm1886, %v1862, %v1885
        %vm1888 = vcmask 1043459
        %v1889 = vsel %vm1888, %v1863, %v1887
        %vm1890 = vcmask 1044484
        %v1891 = vsel %vm1890, %v1864, %v1889
        %vm1892 = vcmask 1045509
        %v1893 = vsel %vm1892, %v1865, %v1891
        %vm1894 = vcmask 1046534
        %v1895 = vsel %vm1894, %v1866, %v1893
        %vm1896 = vcmask 1047559
        %v1897 = vsel %vm1896, %v1867, %v1895
        %v1898 = vsel %vm643, %v1897, 0
        %1900 = vmatpush.msra.mxu0 0.0
        %1901 = vmatpush.msra.mxu0 0.0
        %1902 = vmatpush.msra.mxu0 0.0
        %1903 = vmatpush.msra.mxu0 0.0
        %1904 = vmatpush.msra.mxu0 0.0
        %1905 = vmatpush.msra.mxu0 0.0
        %1906 = vmatpush.msra.mxu0 0.0
        %1907 = vmatpush.msra.mxu0 0.0
        %1908 = vmatpush.msra.mxu0 0.0
        %1909 = vmatpush.msra.mxu0 0.0
        %1910 = vmatpush.msra.mxu0 0.0
        %1911 = vmatpush.msra.mxu0 0.0
        %1912 = vmatpush.msra.mxu0 %v1871
        %1913 = vmatpush.msra.mxu0 %v1870
        %1914 = vmatpush.msra.mxu0 %v1869
        %1915 = vmatpush.msra.mxu0 %v1868
        %1916 = vmatmul.f32.gmra.mxu0 %v1898
        %v1917 = vpop.f32.mrf.mxu0
        %v1918 = vadd.f32 %v1874, %v1917
        %1919 = vdwg.mxu0
        %v1920 = vmax.f32 %v1918, 0.0
        %v1921 = vld [vmem:[%s10] sm:$0xff]
        %v1922 = vld [vmem:[%s10 + $0x8] sm:$0xff]
        %v1923 = vld [vmem:[%s10 + $0x10] sm:$0xff]
        %v1924 = vld [vmem:[%s10 + $0x18] sm:$0xff]
        %v1925 = vld [vmem:[%s11] sm:$0x1]
        %v1927 = vperm.slane %v1925, 0
        %v1930 = vsel %vm643, %v1920, 0
        %1932 = vmatpush.msra.mxu0 0.0
        %1933 = vmatpush.msra.mxu0 0.0
        %1934 = vmatpush.msra.mxu0 0.0
        %1935 = vmatpush.msra.mxu0 0.0
        %1936 = vmatpush.msra.mxu0 0.0
        %1937 = vmatpush.msra.mxu0 0.0
        %1938 = vmatpush.msra.mxu0 0.0
        %1939 = vmatpush.msra.mxu0 0.0
        %1940 = vmatpush.msra.mxu0 0.0
        %1941 = vmatpush.msra.mxu0 0.0
        %1942 = vmatpush.msra.mxu0 0.0
        %1943 = vmatpush.msra.mxu0 0.0
        %1944 = vmatpush.msra.mxu0 %v1924
        %1945 = vmatpush.msra.mxu0 %v1923
        %1946 = vmatpush.msra.mxu0 %v1922
        %1947 = vmatpush.msra.mxu0 %v1921
        %1948 = vmatmul.f32.gmra.mxu0 %v1930
        %v1949 = vpop.f32.mrf.mxu0
        %v1950 = vadd.f32 %v1927, %v1949
        %1951 = vdwg.mxu0
        %1952 = vst [vmem:[%s452] sm:$0xff] %v1950
        %s1953 = sand.u32 %s299, 1
        %s1954 = scalar_lea.sflag [#allocation4], %s1953
        %s1955 = sand.u32 %s299, 1
        %s1956 = smul.addr %s1955, 8
        %s1957 = scalar_lea.vmem [#allocation5], %s1956
        // Predicated region
        $region73: #{tpu_custom_call.1} parent=67 // pred_check
          %p1958 = pneg %p309
        $region74: #{tpu_custom_call.1} parent=67 // pred_check_branch
          %1960 = sbr.rel (%p1958) target = $region76
        $region75: #{tpu_custom_call.1} parent=67 // pred_region
          %1962 = vsyncadd %s1954, 0
          %s1963 = smul.addr %s29, 8
          %s1964 = scalar_lea.hbm %s12, %s1963
          %s1966 = sshll.u32 %s1957, 4
          %s1967 = int_to_ptr.vmem [resolvable:$true] %s1966
          %s1968 = sshll.u32 %s1964, 4
          %s1969 = int_to_ptr.hbm [resolvable:$true] %s1968
          %1971 = dma.vmem_to_hbm [thread:$0]  %s1967, 128, %s1969, %s1954
        $region76: #{tpu_custom_call.1} parent=67 // pred_fallthru
          _
      $region68: #{tpu_custom_call.1} parent=5 // pred_fallthru
        _
      %p1972 = scmp.le.s32.totalorder 2, %s24
      // Predicated region
      $region77: #{tpu_custom_call.1} parent=5 // pred_check
        %p1973 = pneg %p1972
      $region78: #{tpu_custom_call.1} parent=5 // pred_check_branch
        %1975 = sbr.rel (%p1973) target = $region80
      $region79: #{tpu_custom_call.1} parent=5 // pred_region
        %s1976 = ssub.s32 %s24, 2
        // Predicated region
        $region81: #{tpu_custom_call.1} parent=79 // pred_check
          %p1977 = pneg %p315
        $region82: #{tpu_custom_call.1} parent=79 // pred_check_branch
          %1979 = sbr.rel (%p1977) target = $region84
        $region83: #{tpu_custom_call.1} parent=79 // pred_region
          %s1980 = sand.u32 %s300, 1
          %s1981 = scalar_lea.sflag [#allocation4], %s1980
          %s1982 = sand.u32 %s300, 1
          %s1983 = smul.addr %s1982, 8
          %s1984 = scalar_lea.vmem [#allocation5], %s1983
          %1986 = dma.done %s1981, 128
        $region84: #{tpu_custom_call.1} parent=79 // pred_fallthru
          _
      $region80: #{tpu_custom_call.1} parent=5 // pred_fallthru
        _
    $region6: #{tpu_custom_call.1} parent=1 // loop_footer
      %s28 = sadd.s32 1, %s24
    $region7: #{tpu_custom_call.1} parent=1 // loop_footer_branch
      %23 = sbr.rel target = $region3
    $region8: #{tpu_custom_call.1} parent=1 // loop_exit
      _
    %1987 = vsyncpa [#allocation3], 1
    %s1988 = scalar_lea.sflag [#allocation3], 1
    %1989 = vsyncpa %s1988, 1
    %1990 = vsyncpa [#allocation4], 1
    %s1991 = scalar_lea.sflag [#allocation4], 1
    %1992 = vsyncpa %s1991, 1

</llo_original>
